<compile_context>
chip_gen: v5e
topology: v5e:2x2
jax: 0.10.0
libtpu: 0.0.40
codegen_flags: <defaults>
</compile_context>

<pallas_src>
import jax
import jax.numpy as jnp
from jax import lax
from jax.experimental import pallas as pl
from jax.experimental.pallas import tpu as pltpu

# ----------------------------- static config --------------------------------
B = 2                 # batch
IMG_H = IMG_W = 32    # image spatial size (small stand-in)
PATCH = 8             # patch size of the surrogate extractor
GH, GW = IMG_H // PATCH, IMG_W // PATCH
HW = GH * GW          # number of patch tokens (16)
D = 32                # shared embedding dim (surrogate for CLIP/DINO dims)
STEGO_DIM = 90        # stego_head_dim from the module
NUM_CLASSES = 27      # self.num_classes from the module
VOCAB = 1000
TW = 8                # number of word tokens

# power-of-two shift constants (avoid vector integer division in-kernel)
LOG_W = IMG_W.bit_length() - 1
LOG_P = PATCH.bit_length() - 1
assert (1 << LOG_W) == IMG_W and (1 << LOG_P) == PATCH


# ============================ fused Pallas kernel ============================

def _cris_fused_kernel(feats_ref, flip_ref, sent_ref, cls_tok_ref,
                       w1_ref, b1_ref, w2t_ref, b2_ref,
                       wq_ref, wk_ref, wv_ref, out_ref):
    """Stego head -> argmax -> inline attention mask -> masked cls-token
    attention -> L2 normalize -> obj_tokens@sents -> per-class mask
    accumulation -> NN upsample, all in VMEM/registers for one batch element."""
    feats = feats_ref[0]                                   # (HW, D)
    flip = flip_ref[0]                                     # (HW, D)
    sent = sent_ref[0]                                     # (1, D)
    cls_tok = cls_tok_ref[0]                               # (N, D)
    NEG = jnp.float32(-1e30)

    # ---- stego segmentation head (surrogate; pretrained ckpt not reproduced)
    # TODO(synk): real StegoSegmentationHead weights not available; flipped
    # features were un-flipped spatially in glue and are averaged here.
    favg = 0.5 * (feats + flip)                                            # (HW, D)
    h = jnp.maximum(
        jnp.dot(favg, w1_ref[...], preferred_element_type=jnp.float32)
        + b1_ref[...], 0.0)                                                # (HW, STEGO_DIM)
    # transposed logits: classes on sublanes, patches on lanes -> argmax lands
    # directly as a (1, HW) lane vector (no transposes needed downstream).
    logits_t = lax.dot_general(w2t_ref[...], h, (((1,), (1,)), ((), ())),
                               preferred_element_type=jnp.float32)
    logits_t = logits_t + b2_ref[...]                                      # (N, HW)
    maxv = jnp.max(logits_t, axis=0, keepdims=True)                        # (1, HW)
    cand = lax.broadcasted_iota(jnp.int32, logits_t.shape, 0)
    cls_row = jnp.min(jnp.where(logits_t == maxv, cand, NUM_CLASSES),
                      axis=0, keepdims=True)                               # (1, HW) int32

    # attention "allow" one-hot (transposed): allow[r, j] = (attn_cls[j] == r)
    r_iota = lax.broadcasted_iota(jnp.int32, (NUM_CLASSES, HW), 0)
    allow = cls_row == r_iota                                              # (N, HW) bool

    # ---- masked single attention step (surrogate for backbone.get_mask_token)
    # TODO(synk): full CLIP visual transformer (per-block attn_mask) not
    # reproduced; one masked-attention layer over [cls_tokens ; patch tokens].
    scale = jnp.float32(D ** -0.5)
    qp = jnp.dot(cls_tok, wq_ref[...], preferred_element_type=jnp.float32)   # (N, D)
    kp_c = jnp.dot(cls_tok, wk_ref[...], preferred_element_type=jnp.float32) # (N, D)
    vp_c = jnp.dot(cls_tok, wv_ref[...], preferred_element_type=jnp.float32) # (N, D)
    kp_f = jnp.dot(feats, wk_ref[...], preferred_element_type=jnp.float32)   # (HW, D)
    vp_f = jnp.dot(feats, wv_ref[...], preferred_element_type=jnp.float32)   # (HW, D)

    s_cls = lax.dot_general(qp, kp_c, (((1,), (1,)), ((), ())),
                            preferred_element_type=jnp.float32) * scale      # (N, N)
    s_pat = lax.dot_general(qp, kp_f, (((1,), (1,)), ((), ())),
                            preferred_element_type=jnp.float32) * scale      # (N, HW)
    # mask rows built inline: cls block keeps only the diagonal (1-eye -> -inf
    # off-diag), patch block keeps patches assigned to this class (1-onehot^T).
    rr = lax.broadcasted_iota(jnp.int32, (NUM_CLASSES, NUM_CLASSES), 0)
    cc = lax.broadcasted_iota(jnp.int32, (NUM_CLASSES, NUM_CLASSES), 1)
    s_cls = jnp.where(rr == cc, s_cls, NEG)
    s_pat = jnp.where(allow, s_pat, NEG)

    m = jnp.maximum(jnp.max(s_cls, axis=-1, keepdims=True),
                    jnp.max(s_pat, axis=-1, keepdims=True))                  # (N, 1)
    p_cls = jnp.exp(s_cls - m)
    p_pat = jnp.exp(s_pat - m)
    denom = (jnp.sum(p_cls, axis=-1, keepdims=True)
             + jnp.sum(p_pat, axis=-1, keepdims=True))
    inv_d = pl.reciprocal(denom, approx=True)
    tokens = (jnp.dot(p_cls, vp_c, preferred_element_type=jnp.float32)
              + jnp.dot(p_pat, vp_f, preferred_element_type=jnp.float32)) * inv_d  # (N, D)

    # ---- prediction head: normalize, obj_tokens @ sents, per-class accumulate
    sent_n = sent * lax.rsqrt(jnp.sum(sent * sent, axis=-1, keepdims=True))       # (1, D)
    tok_n = tokens * lax.rsqrt(
        jnp.maximum(jnp.sum(tokens * tokens, axis=-1, keepdims=True), 1e-24))     # (N, D)
    pred_id = lax.dot_general(sent_n, tok_n, (((1,), (1,)), ((), ())),
                              preferred_element_type=jnp.float32)                 # (1, N)

    # per-patch prediction value pred_id[attn_cls[j]]  (one-hot matmul on MXU,
    # replaces the 27-way serial where/add loop of the reference)
    pred_patch = jnp.dot(pred_id, allow.astype(jnp.float32),
                         preferred_element_type=jnp.float32)                      # (1, HW)

    # nearest-neighbour upsample to image resolution via a one-hot matmul
    # TODO(synk): reference resizes stego logits (bilinear) before argmax;
    # approximated by NN upsample of the patch-level argmax.
    pix = lax.broadcasted_iota(jnp.int32, (HW, IMG_H * IMG_W), 1)
    pr = pix >> LOG_W                 # pixel row
    pc = pix & (IMG_W - 1)            # pixel col
    patch_of = (pr >> LOG_P) * GW + (pc >> LOG_P)
    j_iota = lax.broadcasted_iota(jnp.int32, (HW, IMG_H * IMG_W), 0)
    up = (j_iota == patch_of).astype(jnp.float32)                                 # (HW, H*W)
    out_ref[0] = jnp.dot(pred_patch, up, preferred_element_type=jnp.float32)      # (1, H*W)


def cris_fused_pallas(feats, flip_feats, sents, cls_tokens,
                      w1, b1, w2t, b2, wq, wk, wv):
    bsz = feats.shape[0]
    out = pl.pallas_call(
        _cris_fused_kernel,
        out_shape=jax.ShapeDtypeStruct((bsz, 1, IMG_H * IMG_W), jnp.float32),
        grid=(bsz,),
        in_specs=[
            pl.BlockSpec((1, HW, D), lambda b: (b, 0, 0)),            # feats
            pl.BlockSpec((1, HW, D), lambda b: (b, 0, 0)),            # flip feats
            pl.BlockSpec((1, 1, D), lambda b: (b, 0, 0)),             # sents
            pl.BlockSpec((1, NUM_CLASSES, D), lambda b: (0, 0, 0)),   # cls tokens (shared)
            pl.BlockSpec((D, STEGO_DIM), lambda b: (0, 0)),           # stego w1
            pl.BlockSpec((1, STEGO_DIM), lambda b: (0, 0)),           # stego b1
            pl.BlockSpec((NUM_CLASSES, STEGO_DIM), lambda b: (0, 0)), # stego w2 (out,in)
            pl.BlockSpec((NUM_CLASSES, 1), lambda b: (0, 0)),         # stego b2 (column)
            pl.BlockSpec((D, D), lambda b: (0, 0)),                   # wq
            pl.BlockSpec((D, D), lambda b: (0, 0)),                   # wk
            pl.BlockSpec((D, D), lambda b: (0, 0)),                   # wv
        ],
        out_specs=pl.BlockSpec((1, 1, IMG_H * IMG_W), lambda b: (b, 0, 0)),
        compiler_params=pltpu.CompilerParams(dimension_semantics=("parallel",)),
    )(feats, flip_feats, sents, cls_tokens, w1, b1, w2t, b2, wq, wk, wv)
    return out.reshape(bsz, IMG_H, IMG_W)


# ========================= plain-JAX glue / surrogates =======================

def encode_text_surrogate(word, embed_table, w_text):
    # TODO(synk): CLIP ViT-B/16 text transformer not reproduced; deterministic
    # embedding + masked mean-pool + linear projection surrogate.
    pad = (word == 0)
    emb = embed_table[word]                               # (B, TW, D)
    valid = (~pad).astype(jnp.float32)[..., None]
    pooled = jnp.sum(emb * valid, axis=1) / jnp.maximum(jnp.sum(valid, axis=1), 1.0)
    return pooled @ w_text                                # (B, D)


def patchify(img, w_patch):
    # img is NCHW (as in the reference forward docstring).
    # TODO(synk): DINO ViT-B/16 extractor (layer-11 'token' descriptors) not
    # reproduced; linear patch-embedding surrogate.
    bsz, c, h, w = img.shape
    x = img.reshape(bsz, c, GH, PATCH, GW, PATCH)
    x = x.transpose(0, 2, 4, 1, 3, 5).reshape(bsz, HW, c * PATCH * PATCH)
    return x @ w_patch                                    # (B, HW, D)


def cris_forward(params, img, word):
    bsz = img.shape[0]
    # pad_mask and contain_obj_mask are computed in the reference forward but
    # never consumed on the eval path, so they are dropped here.

    sents = encode_text_surrogate(word, params["embed"], params["w_text"])  # (B, D)

    feats = patchify(img, params["w_patch"])                                # (B, HW, D)
    flip_feats = patchify(img[:, :, :, ::-1], params["w_patch"])
    # un-flip the patch grid so normal/flipped descriptors align spatially
    flip_feats = flip_feats.reshape(bsz, GH, GW, D)[:, :, ::-1, :].reshape(bsz, HW, D)

    # --- fused CRIS head (single Pallas kernel: stego + mask + attention + pred)
    pred = cris_fused_pallas(
        feats, flip_feats, sents[:, None, :], params["cls_tokens"],
        params["stego_w1"], params["stego_b1"],
        params["stego_w2"], params["stego_b2"],
        params["wq"], params["wk"], params["wv"])                           # (B, H, W)
    # eval path: return pred.view(B, W, H)  (== (B, H_img, W_img) since square)
    return pred


# =================================== main ====================================

if __name__ == "__main__":
    key = jax.random.PRNGKey(0)
    ks = jax.random.split(key, 12)

    params = {
        "embed":    jax.random.normal(ks[0], (VOCAB, D), jnp.float32) * 0.02,
        "w_text":   jax.random.normal(ks[1], (D, D), jnp.float32) * (D ** -0.5),
        "w_patch":  jax.random.normal(ks[2], (3 * PATCH * PATCH, D), jnp.float32) * 0.02,
        "stego_w1": jax.random.normal(ks[3], (D, STEGO_DIM), jnp.float32) * 0.1,
        "stego_b1": jnp.zeros((1, STEGO_DIM), jnp.float32),
        # stored (out_features, in_features) like nn.Linear; used transposed in-kernel
        "stego_w2": jax.random.normal(ks[4], (NUM_CLASSES, STEGO_DIM), jnp.float32) * 0.1,
        "stego_b2": jnp.zeros((NUM_CLASSES, 1), jnp.float32),
        # nn.Parameter(zeros(1, num_classes, embed_dim)) + trunc_normal_(std=0.02)
        "cls_tokens": 0.02 * jax.random.truncated_normal(
            ks[5], -2.0, 2.0, (1, NUM_CLASSES, D), jnp.float32),
        "wq": jax.random.normal(ks[6], (D, D), jnp.float32) * (D ** -0.5),
        "wk": jax.random.normal(ks[7], (D, D), jnp.float32) * (D ** -0.5),
        "wv": jax.random.normal(ks[8], (D, D), jnp.float32) * (D ** -0.5),
    }

    img = jax.random.normal(ks[9], (B, 3, IMG_H, IMG_W), jnp.float32)   # NCHW
    word = jax.random.randint(ks[10], (B, TW), 1, VOCAB, dtype=jnp.int32)
    word = word.at[:, 5:].set(0)   # trailing padding tokens (id 0)

    pred = jax.jit(cris_forward)(params, img, word)
    pred = jax.block_until_ready(pred)

    assert pred.shape == (B, IMG_H, IMG_W), pred.shape
    assert bool(jnp.all(jnp.isfinite(pred)))
    print("KERNEL_OK")
</pallas_src>

<mosaic_0001>
module attributes {stable_mosaic.version = 11 : i64} {
  func.func @_cris_fused_kernel(%arg0: i32, %arg1: memref<1x16x32xf32, #tpu.memory_space<vmem>>, %arg2: memref<1x16x32xf32, #tpu.memory_space<vmem>>, %arg3: memref<1x1x32xf32, #tpu.memory_space<vmem>>, %arg4: memref<1x27x32xf32, #tpu.memory_space<vmem>>, %arg5: memref<32x90xf32, #tpu.memory_space<vmem>>, %arg6: memref<1x90xf32, #tpu.memory_space<vmem>>, %arg7: memref<27x90xf32, #tpu.memory_space<vmem>>, %arg8: memref<27x1xf32, #tpu.memory_space<vmem>>, %arg9: memref<32x32xf32, #tpu.memory_space<vmem>>, %arg10: memref<32x32xf32, #tpu.memory_space<vmem>>, %arg11: memref<32x32xf32, #tpu.memory_space<vmem>>, %arg12: memref<1x1x1024xf32, #tpu.memory_space<vmem>>) attributes {dimension_semantics = [#tpu.dimension_semantics<parallel>], iteration_bounds = array<i64: 2>, scalar_prefetch = 0 : i64, scratch_operands = 0 : i64, tpu.core_type = #tpu.core_type<tc>, window_params = [{transform_indices = @transform_0, window_bounds = array<i64: 1, 16, 32>}, {transform_indices = @transform_1, window_bounds = array<i64: 1, 16, 32>}, {transform_indices = @transform_2, window_bounds = array<i64: 1, 1, 32>}, {pipeline_mode = #tpu.pipeline_mode<synchronous>, transform_indices = @transform_3, window_bounds = array<i64: 1, 27, 32>}, {pipeline_mode = #tpu.pipeline_mode<synchronous>, transform_indices = @transform_4, window_bounds = array<i64: 32, 90>}, {pipeline_mode = #tpu.pipeline_mode<synchronous>, transform_indices = @transform_5, window_bounds = array<i64: 1, 90>}, {pipeline_mode = #tpu.pipeline_mode<synchronous>, transform_indices = @transform_6, window_bounds = array<i64: 27, 90>}, {pipeline_mode = #tpu.pipeline_mode<synchronous>, transform_indices = @transform_7, window_bounds = array<i64: 27, 1>}, {pipeline_mode = #tpu.pipeline_mode<synchronous>, transform_indices = @transform_8, window_bounds = array<i64: 32, 32>}, {pipeline_mode = #tpu.pipeline_mode<synchronous>, transform_indices = @transform_9, window_bounds = array<i64: 32, 32>}, {pipeline_mode = #tpu.pipeline_mode<synchronous>, transform_indices = @transform_10, window_bounds = array<i64: 32, 32>}, {transform_indices = @transform_11, window_bounds = array<i64: 1, 1, 1024>}]} {
    %c0 = arith.constant 0 : index
    %c0_0 = arith.constant 0 : index
    %c0_1 = arith.constant 0 : index
    %0 = vector.load %arg1[%c0, %c0_0, %c0_1] : memref<1x16x32xf32, #tpu.memory_space<vmem>>, vector<1x16x32xf32>
    %1 = vector.shape_cast %0 : vector<1x16x32xf32> to vector<16x32xf32>
    %c0_2 = arith.constant 0 : index
    %c0_3 = arith.constant 0 : index
    %c0_4 = arith.constant 0 : index
    %2 = vector.load %arg2[%c0_2, %c0_3, %c0_4] : memref<1x16x32xf32, #tpu.memory_space<vmem>>, vector<1x16x32xf32>
    %3 = vector.shape_cast %2 : vector<1x16x32xf32> to vector<16x32xf32>
    %c0_5 = arith.constant 0 : index
    %c0_6 = arith.constant 0 : index
    %c0_7 = arith.constant 0 : index
    %4 = vector.load %arg3[%c0_5, %c0_6, %c0_7] : memref<1x1x32xf32, #tpu.memory_space<vmem>>, vector<1x1x32xf32>
    %5 = vector.shape_cast %4 : vector<1x1x32xf32> to vector<1x32xf32>
    %c0_8 = arith.constant 0 : index
    %c0_9 = arith.constant 0 : index
    %c0_10 = arith.constant 0 : index
    %6 = vector.load %arg4[%c0_8, %c0_9, %c0_10] : memref<1x27x32xf32, #tpu.memory_space<vmem>>, vector<1x27x32xf32>
    %7 = vector.shape_cast %6 : vector<1x27x32xf32> to vector<27x32xf32>
    %8 = arith.addf %1, %3 : vector<16x32xf32>
    %cst = arith.constant 5.000000e-01 : f32
    %9 = vector.broadcast %cst : f32 to vector<16x32xf32>
    %10 = arith.mulf %9, %8 : vector<16x32xf32>
    %c0_11 = arith.constant 0 : index
    %c0_12 = arith.constant 0 : index
    %11 = vector.load %arg5[%c0_11, %c0_12] : memref<32x90xf32, #tpu.memory_space<vmem>>, vector<32x90xf32>
    %cst_13 = arith.constant dense<0.000000e+00> : vector<16x90xf32>
    %12 = tpu.matmul %10, %11, %cst_13 {dimension_numbers = #tpu.dot_dimension_numbers<[1], [0], [0], [1], [0, 0, 1, 1], [], []>} : vector<16x32xf32>, vector<32x90xf32>, vector<16x90xf32> -> vector<16x90xf32>
    %c0_14 = arith.constant 0 : index
    %c0_15 = arith.constant 0 : index
    %13 = vector.load %arg6[%c0_14, %c0_15] : memref<1x90xf32, #tpu.memory_space<vmem>>, vector<1x90xf32>
    %14 = vector.broadcast %13 : vector<1x90xf32> to vector<16x90xf32>
    %15 = arith.addf %12, %14 : vector<16x90xf32>
    %cst_16 = arith.constant 0.000000e+00 : f32
    %16 = vector.broadcast %cst_16 : f32 to vector<16x90xf32>
    %17 = arith.maximumf %15, %16 : vector<16x90xf32>
    %c0_17 = arith.constant 0 : index
    %c0_18 = arith.constant 0 : index
    %18 = vector.load %arg7[%c0_17, %c0_18] : memref<27x90xf32, #tpu.memory_space<vmem>>, vector<27x90xf32>
    %cst_19 = arith.constant dense<0.000000e+00> : vector<27x16xf32>
    %19 = tpu.matmul %18, %17, %cst_19 {dimension_numbers = #tpu.dot_dimension_numbers<[1], [1], [0], [0], [0, 0, 1, 0], [], []>} : vector<27x90xf32>, vector<16x90xf32>, vector<27x16xf32> -> vector<27x16xf32>
    %c0_20 = arith.constant 0 : index
    %c0_21 = arith.constant 0 : index
    %20 = vector.load %arg8[%c0_20, %c0_21] : memref<27x1xf32, #tpu.memory_space<vmem>>, vector<27x1xf32>
    %21 = vector.broadcast %20 : vector<27x1xf32> to vector<27x16xf32>
    %22 = arith.addf %19, %21 : vector<27x16xf32>
    %cst_22 = arith.constant dense<0xFF800000> : vector<16xf32>
    %23 = vector.multi_reduction <maximumf>, %22, %cst_22 [0] : vector<27x16xf32> to vector<16xf32>
    %24 = vector.shape_cast %23 : vector<16xf32> to vector<1x16xf32>
    %25 = tpu.iota {dimensions = array<i32: 0>} : vector<27x16xi32>
    %26 = vector.broadcast %24 : vector<1x16xf32> to vector<27x16xf32>
    %27 = arith.cmpf oeq, %22, %26 : vector<27x16xf32>
    %c27_i32 = arith.constant 27 : i32
    %28 = vector.broadcast %c27_i32 : i32 to vector<27x16xi32>
    %29 = arith.select %27, %25, %28 : vector<27x16xi1>, vector<27x16xi32>
    %cst_23 = arith.constant dense<2147483647> : vector<16xi32>
    %30 = vector.multi_reduction <minsi>, %29, %cst_23 [0] : vector<27x16xi32> to vector<16xi32>
    %31 = vector.shape_cast %30 : vector<16xi32> to vector<1x16xi32>
    %32 = tpu.iota {dimensions = array<i32: 0>} : vector<27x16xi32>
    %33 = vector.broadcast %31 : vector<1x16xi32> to vector<27x16xi32>
    %34 = arith.cmpi eq, %33, %32 : vector<27x16xi32>
    %c0_24 = arith.constant 0 : index
    %c0_25 = arith.constant 0 : index
    %35 = vector.load %arg9[%c0_24, %c0_25] : memref<32x32xf32, #tpu.memory_space<vmem>>, vector<32x32xf32>
    %cst_26 = arith.constant dense<0.000000e+00> : vector<27x32xf32>
    %36 = tpu.matmul %7, %35, %cst_26 {dimension_numbers = #tpu.dot_dimension_numbers<[1], [0], [0], [1], [0, 0, 1, 1], [], []>} : vector<27x32xf32>, vector<32x32xf32>, vector<27x32xf32> -> vector<27x32xf32>
    %c0_27 = arith.constant 0 : index
    %c0_28 = arith.constant 0 : index
    %37 = vector.load %arg10[%c0_27, %c0_28] : memref<32x32xf32, #tpu.memory_space<vmem>>, vector<32x32xf32>
    %cst_29 = arith.constant dense<0.000000e+00> : vector<27x32xf32>
    %38 = tpu.matmul %7, %37, %cst_29 {dimension_numbers = #tpu.dot_dimension_numbers<[1], [0], [0], [1], [0, 0, 1, 1], [], []>} : vector<27x32xf32>, vector<32x32xf32>, vector<27x32xf32> -> vector<27x32xf32>
    %c0_30 = arith.constant 0 : index
    %c0_31 = arith.constant 0 : index
    %39 = vector.load %arg11[%c0_30, %c0_31] : memref<32x32xf32, #tpu.memory_space<vmem>>, vector<32x32xf32>
    %cst_32 = arith.constant dense<0.000000e+00> : vector<27x32xf32>
    %40 = tpu.matmul %7, %39, %cst_32 {dimension_numbers = #tpu.dot_dimension_numbers<[1], [0], [0], [1], [0, 0, 1, 1], [], []>} : vector<27x32xf32>, vector<32x32xf32>, vector<27x32xf32> -> vector<27x32xf32>
    %c0_33 = arith.constant 0 : index
    %c0_34 = arith.constant 0 : index
    %41 = vector.load %arg10[%c0_33, %c0_34] : memref<32x32xf32, #tpu.memory_space<vmem>>, vector<32x32xf32>
    %cst_35 = arith.constant dense<0.000000e+00> : vector<16x32xf32>
    %42 = tpu.matmul %1, %41, %cst_35 {dimension_numbers = #tpu.dot_dimension_numbers<[1], [0], [0], [1], [0, 0, 1, 1], [], []>} : vector<16x32xf32>, vector<32x32xf32>, vector<16x32xf32> -> vector<16x32xf32>
    %c0_36 = arith.constant 0 : index
    %c0_37 = arith.constant 0 : index
    %43 = vector.load %arg11[%c0_36, %c0_37] : memref<32x32xf32, #tpu.memory_space<vmem>>, vector<32x32xf32>
    %cst_38 = arith.constant dense<0.000000e+00> : vector<16x32xf32>
    %44 = tpu.matmul %1, %43, %cst_38 {dimension_numbers = #tpu.dot_dimension_numbers<[1], [0], [0], [1], [0, 0, 1, 1], [], []>} : vector<16x32xf32>, vector<32x32xf32>, vector<16x32xf32> -> vector<16x32xf32>
    %cst_39 = arith.constant dense<0.000000e+00> : vector<27x27xf32>
    %45 = tpu.matmul %36, %38, %cst_39 {dimension_numbers = #tpu.dot_dimension_numbers<[1], [1], [0], [0], [0, 0, 1, 0], [], []>} : vector<27x32xf32>, vector<27x32xf32>, vector<27x27xf32> -> vector<27x27xf32>
    %cst_40 = arith.constant 0.176776692 : f32
    %46 = vector.broadcast %cst_40 : f32 to vector<27x27xf32>
    %47 = arith.mulf %45, %46 : vector<27x27xf32>
    %cst_41 = arith.constant dense<0.000000e+00> : vector<27x16xf32>
    %48 = tpu.matmul %36, %42, %cst_41 {dimension_numbers = #tpu.dot_dimension_numbers<[1], [1], [0], [0], [0, 0, 1, 0], [], []>} : vector<27x32xf32>, vector<16x32xf32>, vector<27x16xf32> -> vector<27x16xf32>
    %cst_42 = arith.constant 0.176776692 : f32
    %49 = vector.broadcast %cst_42 : f32 to vector<27x16xf32>
    %50 = arith.mulf %48, %49 : vector<27x16xf32>
    %51 = tpu.iota {dimensions = array<i32: 0>} : vector<27x27xi32>
    %52 = tpu.iota {dimensions = array<i32: 1>} : vector<27x27xi32>
    %53 = arith.cmpi eq, %51, %52 : vector<27x27xi32>
    %cst_43 = arith.constant -1.000000e+30 : f32
    %54 = vector.broadcast %cst_43 : f32 to vector<27x27xf32>
    %55 = arith.select %53, %47, %54 : vector<27x27xi1>, vector<27x27xf32>
    %cst_44 = arith.constant -1.000000e+30 : f32
    %56 = vector.broadcast %cst_44 : f32 to vector<27x16xf32>
    %57 = arith.select %34, %50, %56 : vector<27x16xi1>, vector<27x16xf32>
    %cst_45 = arith.constant dense<0xFF800000> : vector<27xf32>
    %58 = vector.multi_reduction <maximumf>, %55, %cst_45 [1] : vector<27x27xf32> to vector<27xf32>
    %59 = vector.shape_cast %58 : vector<27xf32> to vector<27x1xf32>
    %cst_46 = arith.constant dense<0xFF800000> : vector<27xf32>
    %60 = vector.multi_reduction <maximumf>, %57, %cst_46 [1] : vector<27x16xf32> to vector<27xf32>
    %61 = vector.shape_cast %60 : vector<27xf32> to vector<27x1xf32>
    %62 = arith.maximumf %59, %61 : vector<27x1xf32>
    %63 = vector.broadcast %62 : vector<27x1xf32> to vector<27x27xf32>
    %64 = arith.subf %55, %63 : vector<27x27xf32>
    %65 = math.exp %64 : vector<27x27xf32>
    %66 = vector.broadcast %62 : vector<27x1xf32> to vector<27x16xf32>
    %67 = arith.subf %57, %66 : vector<27x16xf32>
    %68 = math.exp %67 : vector<27x16xf32>
    %cst_47 = arith.constant dense<0.000000e+00> : vector<27xf32>
    %69 = vector.multi_reduction <add>, %65, %cst_47 [1] : vector<27x27xf32> to vector<27xf32>
    %70 = vector.shape_cast %69 : vector<27xf32> to vector<27x1xf32>
    %cst_48 = arith.constant dense<0.000000e+00> : vector<27xf32>
    %71 = vector.multi_reduction <add>, %68, %cst_48 [1] : vector<27x16xf32> to vector<27xf32>
    %72 = vector.shape_cast %71 : vector<27xf32> to vector<27x1xf32>
    %73 = arith.addf %70, %72 : vector<27x1xf32>
    %74 = tpu.reciprocal %73 {approx = true} : vector<27x1xf32> -> vector<27x1xf32>
    %cst_49 = arith.constant dense<0.000000e+00> : vector<27x32xf32>
    %75 = tpu.matmul %65, %40, %cst_49 {dimension_numbers = #tpu.dot_dimension_numbers<[1], [0], [0], [1], [0, 0, 1, 1], [], []>} : vector<27x27xf32>, vector<27x32xf32>, vector<27x32xf32> -> vector<27x32xf32>
    %cst_50 = arith.constant dense<0.000000e+00> : vector<27x32xf32>
    %76 = tpu.matmul %68, %44, %cst_50 {dimension_numbers = #tpu.dot_dimension_numbers<[1], [0], [0], [1], [0, 0, 1, 1], [], []>} : vector<27x16xf32>, vector<16x32xf32>, vector<27x32xf32> -> vector<27x32xf32>
    %77 = arith.addf %75, %76 : vector<27x32xf32>
    %78 = vector.broadcast %74 : vector<27x1xf32> to vector<27x32xf32>
    %79 = arith.mulf %77, %78 : vector<27x32xf32>
    %80 = arith.mulf %5, %5 : vector<1x32xf32>
    %cst_51 = arith.constant dense<0.000000e+00> : vector<1xf32>
    %81 = vector.multi_reduction <add>, %80, %cst_51 [1] : vector<1x32xf32> to vector<1xf32>
    %82 = vector.shape_cast %81 : vector<1xf32> to vector<1x1xf32>
    %83 = math.rsqrt %82 : vector<1x1xf32>
    %84 = vector.broadcast %83 : vector<1x1xf32> to vector<1x32xf32>
    %85 = arith.mulf %5, %84 : vector<1x32xf32>
    %86 = arith.mulf %79, %79 : vector<27x32xf32>
    %cst_52 = arith.constant dense<0.000000e+00> : vector<27xf32>
    %87 = vector.multi_reduction <add>, %86, %cst_52 [1] : vector<27x32xf32> to vector<27xf32>
    %88 = vector.shape_cast %87 : vector<27xf32> to vector<27x1xf32>
    %cst_53 = arith.constant 1.000000e-24 : f32
    %89 = vector.broadcast %cst_53 : f32 to vector<27x1xf32>
    %90 = arith.maximumf %88, %89 : vector<27x1xf32>
    %91 = math.rsqrt %90 : vector<27x1xf32>
    %92 = vector.broadcast %91 : vector<27x1xf32> to vector<27x32xf32>
    %93 = arith.mulf %79, %92 : vector<27x32xf32>
    %cst_54 = arith.constant dense<0.000000e+00> : vector<1x27xf32>
    %94 = tpu.matmul %85, %93, %cst_54 {dimension_numbers = #tpu.dot_dimension_numbers<[1], [1], [0], [0], [0, 0, 1, 0], [], []>} : vector<1x32xf32>, vector<27x32xf32>, vector<1x27xf32> -> vector<1x27xf32>
    %95 = arith.extui %34 : vector<27x16xi1> to vector<27x16xi32>
    %96 = arith.sitofp %95 : vector<27x16xi32> to vector<27x16xf32>
    %cst_55 = arith.constant dense<0.000000e+00> : vector<1x16xf32>
    %97 = tpu.matmul %94, %96, %cst_55 {dimension_numbers = #tpu.dot_dimension_numbers<[1], [0], [0], [1], [0, 0, 1, 1], [], []>} : vector<1x27xf32>, vector<27x16xf32>, vector<1x16xf32> -> vector<1x16xf32>
    %98 = tpu.iota {dimensions = array<i32: 1>} : vector<16x1024xi32>
    %c5_i32 = arith.constant 5 : i32
    %99 = vector.broadcast %c5_i32 : i32 to vector<16x1024xi32>
    %100 = arith.shrsi %98, %99 : vector<16x1024xi32>
    %c31_i32 = arith.constant 31 : i32
    %101 = vector.broadcast %c31_i32 : i32 to vector<16x1024xi32>
    %102 = arith.andi %98, %101 : vector<16x1024xi32>
    %c3_i32 = arith.constant 3 : i32
    %103 = vector.broadcast %c3_i32 : i32 to vector<16x1024xi32>
    %104 = arith.shrsi %100, %103 : vector<16x1024xi32>
    %c4_i32 = arith.constant 4 : i32
    %105 = vector.broadcast %c4_i32 : i32 to vector<16x1024xi32>
    %106 = arith.muli %104, %105 : vector<16x1024xi32>
    %c3_i32_56 = arith.constant 3 : i32
    %107 = vector.broadcast %c3_i32_56 : i32 to vector<16x1024xi32>
    %108 = arith.shrsi %102, %107 : vector<16x1024xi32>
    %109 = arith.addi %106, %108 : vector<16x1024xi32>
    %110 = tpu.iota {dimensions = array<i32: 0>} : vector<16x1024xi32>
    %111 = arith.cmpi eq, %110, %109 : vector<16x1024xi32>
    %112 = arith.extui %111 : vector<16x1024xi1> to vector<16x1024xi32>
    %113 = arith.sitofp %112 : vector<16x1024xi32> to vector<16x1024xf32>
    %cst_57 = arith.constant dense<0.000000e+00> : vector<1x1024xf32>
    %114 = tpu.matmul %97, %113, %cst_57 {dimension_numbers = #tpu.dot_dimension_numbers<[1], [0], [0], [1], [0, 0, 1, 1], [], []>} : vector<1x16xf32>, vector<16x1024xf32>, vector<1x1024xf32> -> vector<1x1024xf32>
    %c0_58 = arith.constant 0 : index
    %c0_59 = arith.constant 0 : index
    %c0_60 = arith.constant 0 : index
    %115 = vector.load %arg12[%c0_58, %c0_59, %c0_60] : memref<1x1x1024xf32, #tpu.memory_space<vmem>>, vector<1x1x1024xf32>
    %116 = vector.shape_cast %115 : vector<1x1x1024xf32> to vector<1x1024xf32>
    %117 = vector.shape_cast %114 : vector<1x1024xf32> to vector<1x1x1024xf32>
    tpu.vector_store %arg12[%c0_58, %c0_59, %c0_60], %117 {strides = array<i32>} : memref<1x1x1024xf32, #tpu.memory_space<vmem>>, vector<1x1x1024xf32>,
    return
  }
  func.func @transform_0(%arg0: i32) -> (i32, i32, i32) {
    %c0_i32 = arith.constant 0 : i32
    %c0_i32_0 = arith.constant 0 : i32
    %c0_i32_1 = arith.constant 0 : i32
    return %arg0, %c0_i32, %c0_i32_0 : i32, i32, i32
  }
  func.func @transform_1(%arg0: i32) -> (i32, i32, i32) {
    %c0_i32 = arith.constant 0 : i32
    %c0_i32_0 = arith.constant 0 : i32
    %c0_i32_1 = arith.constant 0 : i32
    return %arg0, %c0_i32, %c0_i32_0 : i32, i32, i32
  }
  func.func @transform_2(%arg0: i32) -> (i32, i32, i32) {
    %c0_i32 = arith.constant 0 : i32
    %c0_i32_0 = arith.constant 0 : i32
    %c0_i32_1 = arith.constant 0 : i32
    return %arg0, %c0_i32, %c0_i32_0 : i32, i32, i32
  }
  func.func @transform_3(%arg0: i32) -> (i32, i32, i32) {
    %c0_i32 = arith.constant 0 : i32
    %c0_i32_0 = arith.constant 0 : i32
    %c0_i32_1 = arith.constant 0 : i32
    %c0_i32_2 = arith.constant 0 : i32
    return %c0_i32, %c0_i32_0, %c0_i32_1 : i32, i32, i32
  }
  func.func @transform_4(%arg0: i32) -> (i32, i32) {
    %c0_i32 = arith.constant 0 : i32
    %c0_i32_0 = arith.constant 0 : i32
    %c0_i32_1 = arith.constant 0 : i32
    return %c0_i32, %c0_i32_0 : i32, i32
  }
  func.func @transform_5(%arg0: i32) -> (i32, i32) {
    %c0_i32 = arith.constant 0 : i32
    %c0_i32_0 = arith.constant 0 : i32
    %c0_i32_1 = arith.constant 0 : i32
    return %c0_i32, %c0_i32_0 : i32, i32
  }
  func.func @transform_6(%arg0: i32) -> (i32, i32) {
    %c0_i32 = arith.constant 0 : i32
    %c0_i32_0 = arith.constant 0 : i32
    %c0_i32_1 = arith.constant 0 : i32
    return %c0_i32, %c0_i32_0 : i32, i32
  }
  func.func @transform_7(%arg0: i32) -> (i32, i32) {
    %c0_i32 = arith.constant 0 : i32
    %c0_i32_0 = arith.constant 0 : i32
    %c0_i32_1 = arith.constant 0 : i32
    return %c0_i32, %c0_i32_0 : i32, i32
  }
  func.func @transform_8(%arg0: i32) -> (i32, i32) {
    %c0_i32 = arith.constant 0 : i32
    %c0_i32_0 = arith.constant 0 : i32
    %c0_i32_1 = arith.constant 0 : i32
    return %c0_i32, %c0_i32_0 : i32, i32
  }
  func.func @transform_9(%arg0: i32) -> (i32, i32) {
    %c0_i32 = arith.constant 0 : i32
    %c0_i32_0 = arith.constant 0 : i32
    %c0_i32_1 = arith.constant 0 : i32
    return %c0_i32, %c0_i32_0 : i32, i32
  }
  func.func @transform_10(%arg0: i32) -> (i32, i32) {
    %c0_i32 = arith.constant 0 : i32
    %c0_i32_0 = arith.constant 0 : i32
    %c0_i32_1 = arith.constant 0 : i32
    return %c0_i32, %c0_i32_0 : i32, i32
  }
  func.func @transform_11(%arg0: i32) -> (i32, i32, i32) {
    %c0_i32 = arith.constant 0 : i32
    %c0_i32_0 = arith.constant 0 : i32
    %c0_i32_1 = arith.constant 0 : i32
    return %arg0, %c0_i32, %c0_i32_0 : i32, i32, i32
  }
}

</mosaic_0001>

<llo_original>
// kernel: cris_forward.1
$region0: #{cris_forward.1}
  #allocation0 [shape = 'u32[]', space=smem, size = 0x4, offset = 0x4, fixed_abs, tag = 'smem constant byte address 0x4 - core index']
  #allocation1 [shape = 'u32[72,128]{1,0:T(1,128)}', space=vmem, size = 0x9000, scoped, tag = 'internal scratch']
  %s0 = inlined_call_operand.vmem [shape: f32[2,16,32], index: 0, kind: input, shape index: {}]
  %s1 = inlined_call_operand.vmem [shape: f32[2,16,32], index: 1, kind: input, shape index: {}]
  %s2 = inlined_call_operand.vmem [shape: f32[2,1,32], index: 2, kind: input, shape index: {}]
  %s3 = inlined_call_operand.vmem [shape: f32[1,27,32], index: 3, kind: input, shape index: {}]
  %s4 = inlined_call_operand.vmem [shape: f32[32,90], index: 4, kind: input, shape index: {}]
  %s5 = inlined_call_operand.vmem [shape: f32[1,90], index: 5, kind: input, shape index: {}]
  %s6 = inlined_call_operand.vmem [shape: f32[27,90], index: 6, kind: input, shape index: {}]
  %s7 = inlined_call_operand.vmem [shape: f32[27,1], index: 7, kind: input, shape index: {}]
  %s8 = inlined_call_operand.vmem [shape: f32[32,32], index: 8, kind: input, shape index: {}]
  %s9 = inlined_call_operand.vmem [shape: f32[32,32], index: 9, kind: input, shape index: {}]
  %s10 = inlined_call_operand.vmem [shape: f32[32,32], index: 10, kind: input, shape index: {}]
  %s11 = inlined_call_operand.vmem [shape: f32[2,1,1024], index: 11, kind: output, shape index: {}]
  %s12 = sld [smem:[#allocation0]]
  $region77: #{cris_forward.1} parent=0
    _
  %s14 = ssub.s32 1, %s12
  %s15 = scalar_select 0, %s14, %s12
  loop: start=0, step=1, limit=4
  $region2: #{cris_forward.1} parent=0 // loop_pre_header
    _
  $region3: #{cris_forward.1} parent=0 // loop_header
    %s17 = sphi 0, %s21
    %p18 = scmp.ge.s32.totalorder %s17, 4
    %s27 = sphi 0, %s29
    %s30 = sphi 0, %s27
    %s31 = sphi 0, %s30
    %s47 = sphi 0, %s31
    %s53 = sphi 0, %s55
    %s56 = sphi 0, %s53
    %s57 = sphi 0, %s56
    %s73 = sphi 0, %s57
    %s79 = sphi 0, %s81
    %s82 = sphi 0, %s79
    %s83 = sphi 0, %s82
    %s99 = sphi 0, %s83
    %s103 = sphi 0, %s103
    %s105 = sphi 0, %s103
    %s106 = sphi 0, %s105
    %s120 = sphi 0, %s106
    %s124 = sphi 0, %s124
    %s126 = sphi 0, %s124
    %s127 = sphi 0, %s126
    %s141 = sphi 0, %s127
    %s145 = sphi 0, %s145
    %s147 = sphi 0, %s145
    %s148 = sphi 0, %s147
    %s162 = sphi 0, %s148
    %s166 = sphi 0, %s166
    %s168 = sphi 0, %s166
    %s169 = sphi 0, %s168
    %s183 = sphi 0, %s169
    %s187 = sphi 0, %s187
    %s189 = sphi 0, %s187
    %s190 = sphi 0, %s189
    %s204 = sphi 0, %s190
    %s208 = sphi 0, %s208
    %s210 = sphi 0, %s208
    %s211 = sphi 0, %s210
    %s225 = sphi 0, %s211
    %s229 = sphi 0, %s229
    %s231 = sphi 0, %s229
    %s232 = sphi 0, %s231
    %s246 = sphi 0, %s232
    %s250 = sphi 0, %s250
    %s252 = sphi 0, %s250
    %s253 = sphi 0, %s252
    %s267 = sphi 0, %s253
    %s273 = sphi 0, %s275
    %s276 = sphi 0, %s273
    %s277 = sphi 0, %s276
    %s293 = sphi 0, %s277
  $region4: #{cris_forward.1} parent=0 // loop_header_branch
    %20 = sbr.rel (%p18) target = $region8
  $region5: #{cris_forward.1} parent=0 // loop_body
    %s22 = ssub.s32 %s17, 1
    %s23 = ssub.s32 %s17, 2
    %s24 = sadd.s32 %s17, 1
    %s25 = ssub.s32 %s17, %s24
    %p26 = scmp.eq.s32.totalorder %s25, 0
    %s28 = sadd.s32 %s27, 1
    %s29 = scalar_select %p26, %s27, %s28
    %p32 = pneg %p26
    %p33 = scmp.eq.s32.totalorder %s17, 1
    %p34 = por %p32, %p33
    %p35 = scmp.ne.s32.totalorder %s27, %s30
    %p36 = scmp.eq.s32.totalorder %s17, 0
    %p37 = por %p35, %p36
    %p38 = scmp.ne.s32.totalorder %s27, %s30
    %p39 = scmp.eq.s32.totalorder %s22, 1
    %p40 = por %p38, %p39
    %p41 = scmp.ne.s32.totalorder %s30, %s31
    %p42 = scmp.eq.s32.totalorder %s22, 0
    %p43 = por %p41, %p42
    %p44 = scmp.ne.s32.totalorder %s30, %s31
    %p45 = scmp.eq.s32.totalorder %s23, 1
    %p46 = por %p44, %p45
    %p48 = scmp.ne.s32.totalorder %s31, %s47
    %p49 = scmp.eq.s32.totalorder %s23, 0
    %p50 = por %p48, %p49
    %s51 = ssub.s32 %s17, %s24
    %p52 = scmp.eq.s32.totalorder %s51, 0
    %s54 = sadd.s32 %s53, 1
    %s55 = scalar_select %p52, %s53, %s54
    %p58 = pneg %p52
    %p59 = scmp.eq.s32.totalorder %s17, 1
    %p60 = por %p58, %p59
    %p61 = scmp.ne.s32.totalorder %s53, %s56
    %p62 = scmp.eq.s32.totalorder %s17, 0
    %p63 = por %p61, %p62
    %p64 = scmp.ne.s32.totalorder %s53, %s56
    %p65 = scmp.eq.s32.totalorder %s22, 1
    %p66 = por %p64, %p65
    %p67 = scmp.ne.s32.totalorder %s56, %s57
    %p68 = scmp.eq.s32.totalorder %s22, 0
    %p69 = por %p67, %p68
    %p70 = scmp.ne.s32.totalorder %s56, %s57
    %p71 = scmp.eq.s32.totalorder %s23, 1
    %p72 = por %p70, %p71
    %p74 = scmp.ne.s32.totalorder %s57, %s73
    %p75 = scmp.eq.s32.totalorder %s23, 0
    %p76 = por %p74, %p75
    %s77 = ssub.s32 %s17, %s24
    %p78 = scmp.eq.s32.totalorder %s77, 0
    %s80 = sadd.s32 %s79, 1
    %s81 = scalar_select %p78, %s79, %s80
    %p84 = pneg %p78
    %p85 = scmp.eq.s32.totalorder %s17, 1
    %p86 = por %p84, %p85
    %p87 = scmp.ne.s32.totalorder %s79, %s82
    %p88 = scmp.eq.s32.totalorder %s17, 0
    %p89 = por %p87, %p88
    %p90 = scmp.ne.s32.totalorder %s79, %s82
    %p91 = scmp.eq.s32.totalorder %s22, 1
    %p92 = por %p90, %p91
    %p93 = scmp.ne.s32.totalorder %s82, %s83
    %p94 = scmp.eq.s32.totalorder %s22, 0
    %p95 = por %p93, %p94
    %p96 = scmp.ne.s32.totalorder %s82, %s83
    %p97 = scmp.eq.s32.totalorder %s23, 1
    %p98 = por %p96, %p97
    %p100 = scmp.ne.s32.totalorder %s83, %s99
    %p101 = scmp.eq.s32.totalorder %s23, 0
    %p102 = por %p100, %p101
    %s104 = sadd.s32 %s103, 1
    %p107 = scmp.eq.s32.totalorder %s17, 1
    %p108 = scmp.ne.s32.totalorder %s103, %s105
    %p109 = scmp.eq.s32.totalorder %s17, 0
    %p110 = por %p108, %p109
    %p111 = scmp.ne.s32.totalorder %s103, %s105
    %p112 = scmp.eq.s32.totalorder %s22, 1
    %p113 = por %p111, %p112
    %p114 = scmp.ne.s32.totalorder %s105, %s106
    %p115 = scmp.eq.s32.totalorder %s22, 0
    %p116 = por %p114, %p115
    %p117 = scmp.ne.s32.totalorder %s105, %s106
    %p118 = scmp.eq.s32.totalorder %s23, 1
    %p119 = por %p117, %p118
    %p121 = scmp.ne.s32.totalorder %s106, %s120
    %p122 = scmp.eq.s32.totalorder %s23, 0
    %p123 = por %p121, %p122
    %s125 = sadd.s32 %s124, 1
    %p128 = scmp.eq.s32.totalorder %s17, 1
    %p129 = scmp.ne.s32.totalorder %s124, %s126
    %p130 = scmp.eq.s32.totalorder %s17, 0
    %p131 = por %p129, %p130
    %p132 = scmp.ne.s32.totalorder %s124, %s126
    %p133 = scmp.eq.s32.totalorder %s22, 1
    %p134 = por %p132, %p133
    %p135 = scmp.ne.s32.totalorder %s126, %s127
    %p136 = scmp.eq.s32.totalorder %s22, 0
    %p137 = por %p135, %p136
    %p138 = scmp.ne.s32.totalorder %s126, %s127
    %p139 = scmp.eq.s32.totalorder %s23, 1
    %p140 = por %p138, %p139
    %p142 = scmp.ne.s32.totalorder %s127, %s141
    %p143 = scmp.eq.s32.totalorder %s23, 0
    %p144 = por %p142, %p143
    %s146 = sadd.s32 %s145, 1
    %p149 = scmp.eq.s32.totalorder %s17, 1
    %p150 = scmp.ne.s32.totalorder %s145, %s147
    %p151 = scmp.eq.s32.totalorder %s17, 0
    %p152 = por %p150, %p151
    %p153 = scmp.ne.s32.totalorder %s145, %s147
    %p154 = scmp.eq.s32.totalorder %s22, 1
    %p155 = por %p153, %p154
    %p156 = scmp.ne.s32.totalorder %s147, %s148
    %p157 = scmp.eq.s32.totalorder %s22, 0
    %p158 = por %p156, %p157
    %p159 = scmp.ne.s32.totalorder %s147, %s148
    %p160 = scmp.eq.s32.totalorder %s23, 1
    %p161 = por %p159, %p160
    %p163 = scmp.ne.s32.totalorder %s148, %s162
    %p164 = scmp.eq.s32.totalorder %s23, 0
    %p165 = por %p163, %p164
    %s167 = sadd.s32 %s166, 1
    %p170 = scmp.eq.s32.totalorder %s17, 1
    %p171 = scmp.ne.s32.totalorder %s166, %s168
    %p172 = scmp.eq.s32.totalorder %s17, 0
    %p173 = por %p171, %p172
    %p174 = scmp.ne.s32.totalorder %s166, %s168
    %p175 = scmp.eq.s32.totalorder %s22, 1
    %p176 = por %p174, %p175
    %p177 = scmp.ne.s32.totalorder %s168, %s169
    %p178 = scmp.eq.s32.totalorder %s22, 0
    %p179 = por %p177, %p178
    %p180 = scmp.ne.s32.totalorder %s168, %s169
    %p181 = scmp.eq.s32.totalorder %s23, 1
    %p182 = por %p180, %p181
    %p184 = scmp.ne.s32.totalorder %s169, %s183
    %p185 = scmp.eq.s32.totalorder %s23, 0
    %p186 = por %p184, %p185
    %s188 = sadd.s32 %s187, 1
    %p191 = scmp.eq.s32.totalorder %s17, 1
    %p192 = scmp.ne.s32.totalorder %s187, %s189
    %p193 = scmp.eq.s32.totalorder %s17, 0
    %p194 = por %p192, %p193
    %p195 = scmp.ne.s32.totalorder %s187, %s189
    %p196 = scmp.eq.s32.totalorder %s22, 1
    %p197 = por %p195, %p196
    %p198 = scmp.ne.s32.totalorder %s189, %s190
    %p199 = scmp.eq.s32.totalorder %s22, 0
    %p200 = por %p198, %p199
    %p201 = scmp.ne.s32.totalorder %s189, %s190
    %p202 = scmp.eq.s32.totalorder %s23, 1
    %p203 = por %p201, %p202
    %p205 = scmp.ne.s32.totalorder %s190, %s204
    %p206 = scmp.eq.s32.totalorder %s23, 0
    %p207 = por %p205, %p206
    %s209 = sadd.s32 %s208, 1
    %p212 = scmp.eq.s32.totalorder %s17, 1
    %p213 = scmp.ne.s32.totalorder %s208, %s210
    %p214 = scmp.eq.s32.totalorder %s17, 0
    %p215 = por %p213, %p214
    %p216 = scmp.ne.s32.totalorder %s208, %s210
    %p217 = scmp.eq.s32.totalorder %s22, 1
    %p218 = por %p216, %p217
    %p219 = scmp.ne.s32.totalorder %s210, %s211
    %p220 = scmp.eq.s32.totalorder %s22, 0
    %p221 = por %p219, %p220
    %p222 = scmp.ne.s32.totalorder %s210, %s211
    %p223 = scmp.eq.s32.totalorder %s23, 1
    %p224 = por %p222, %p223
    %p226 = scmp.ne.s32.totalorder %s211, %s225
    %p227 = scmp.eq.s32.totalorder %s23, 0
    %p228 = por %p226, %p227
    %s230 = sadd.s32 %s229, 1
    %p233 = scmp.eq.s32.totalorder %s17, 1
    %p234 = scmp.ne.s32.totalorder %s229, %s231
    %p235 = scmp.eq.s32.totalorder %s17, 0
    %p236 = por %p234, %p235
    %p237 = scmp.ne.s32.totalorder %s229, %s231
    %p238 = scmp.eq.s32.totalorder %s22, 1
    %p239 = por %p237, %p238
    %p240 = scmp.ne.s32.totalorder %s231, %s232
    %p241 = scmp.eq.s32.totalorder %s22, 0
    %p242 = por %p240, %p241
    %p243 = scmp.ne.s32.totalorder %s231, %s232
    %p244 = scmp.eq.s32.totalorder %s23, 1
    %p245 = por %p243, %p244
    %p247 = scmp.ne.s32.totalorder %s232, %s246
    %p248 = scmp.eq.s32.totalorder %s23, 0
    %p249 = por %p247, %p248
    %s251 = sadd.s32 %s250, 1
    %p254 = scmp.eq.s32.totalorder %s17, 1
    %p255 = scmp.ne.s32.totalorder %s250, %s252
    %p256 = scmp.eq.s32.totalorder %s17, 0
    %p257 = por %p255, %p256
    %p258 = scmp.ne.s32.totalorder %s250, %s252
    %p259 = scmp.eq.s32.totalorder %s22, 1
    %p260 = por %p258, %p259
    %p261 = scmp.ne.s32.totalorder %s252, %s253
    %p262 = scmp.eq.s32.totalorder %s22, 0
    %p263 = por %p261, %p262
    %p264 = scmp.ne.s32.totalorder %s252, %s253
    %p265 = scmp.eq.s32.totalorder %s23, 1
    %p266 = por %p264, %p265
    %p268 = scmp.ne.s32.totalorder %s253, %s267
    %p269 = scmp.eq.s32.totalorder %s23, 0
    %p270 = por %p268, %p269
    %s271 = ssub.s32 %s17, %s24
    %p272 = scmp.eq.s32.totalorder %s271, 0
    %s274 = sadd.s32 %s273, 1
    %s275 = scalar_select %p272, %s273, %s274
    %p278 = pneg %p272
    %p279 = scmp.eq.s32.totalorder %s17, 1
    %p280 = por %p278, %p279
    %p281 = scmp.ne.s32.totalorder %s273, %s276
    %p282 = scmp.eq.s32.totalorder %s17, 0
    %p283 = por %p281, %p282
    %p284 = scmp.ne.s32.totalorder %s273, %s276
    %p285 = scmp.eq.s32.totalorder %s22, 1
    %p286 = por %p284, %p285
    %p287 = scmp.ne.s32.totalorder %s276, %s277
    %p288 = scmp.eq.s32.totalorder %s22, 0
    %p289 = por %p287, %p288
    %p290 = scmp.ne.s32.totalorder %s276, %s277
    %p291 = scmp.eq.s32.totalorder %s23, 1
    %p292 = por %p290, %p291
    %p294 = scmp.ne.s32.totalorder %s277, %s293
    %p295 = scmp.eq.s32.totalorder %s23, 0
    %p296 = por %p294, %p295
    %p297 = scmp.le.s32.totalorder 1, %s17
    %p298 = scmp.lt.s32.totalorder %s17, 3
    %p299 = pnand %p297, %p298
    %p300 = pneg %p299
    // Predicated region
    $region9: #{cris_forward.1} parent=5 // pred_check
      _
    $region10: #{cris_forward.1} parent=5 // pred_check_branch
      %302 = sbr.rel (%p299) target = $region12
    $region11: #{cris_forward.1} parent=5 // pred_region
      %s303 = ssub.s32 %s17, 1
      // Predicated region
      $region13: #{cris_forward.1} parent=11 // pred_check
        %p304 = pneg %p116
      $region14: #{cris_forward.1} parent=11 // pred_check_branch
        %306 = sbr.rel (%p304) target = $region16
      $region15: #{cris_forward.1} parent=11 // pred_region
        _
      $region16: #{cris_forward.1} parent=11 // pred_fallthru
        _
      // Predicated region
      $region17: #{cris_forward.1} parent=11 // pred_check
        %p307 = pneg %p137
      $region18: #{cris_forward.1} parent=11 // pred_check_branch
        %309 = sbr.rel (%p307) target = $region20
      $region19: #{cris_forward.1} parent=11 // pred_region
        _
      $region20: #{cris_forward.1} parent=11 // pred_fallthru
        _
      // Predicated region
      $region21: #{cris_forward.1} parent=11 // pred_check
        %p310 = pneg %p158
      $region22: #{cris_forward.1} parent=11 // pred_check_branch
        %312 = sbr.rel (%p310) target = $region24
      $region23: #{cris_forward.1} parent=11 // pred_region
        _
      $region24: #{cris_forward.1} parent=11 // pred_fallthru
        _
      // Predicated region
      $region25: #{cris_forward.1} parent=11 // pred_check
        %p313 = pneg %p179
      $region26: #{cris_forward.1} parent=11 // pred_check_branch
        %315 = sbr.rel (%p313) target = $region28
      $region27: #{cris_forward.1} parent=11 // pred_region
        _
      $region28: #{cris_forward.1} parent=11 // pred_fallthru
        _
      // Predicated region
      $region29: #{cris_forward.1} parent=11 // pred_check
        %p316 = pneg %p200
      $region30: #{cris_forward.1} parent=11 // pred_check_branch
        %318 = sbr.rel (%p316) target = $region32
      $region31: #{cris_forward.1} parent=11 // pred_region
        _
      $region32: #{cris_forward.1} parent=11 // pred_fallthru
        _
      // Predicated region
      $region33: #{cris_forward.1} parent=11 // pred_check
        %p319 = pneg %p221
      $region34: #{cris_forward.1} parent=11 // pred_check_branch
        %321 = sbr.rel (%p319) target = $region36
      $region35: #{cris_forward.1} parent=11 // pred_region
        _
      $region36: #{cris_forward.1} parent=11 // pred_fallthru
        _
      // Predicated region
      $region37: #{cris_forward.1} parent=11 // pred_check
        %p322 = pneg %p242
      $region38: #{cris_forward.1} parent=11 // pred_check_branch
        %324 = sbr.rel (%p322) target = $region40
      $region39: #{cris_forward.1} parent=11 // pred_region
        _
      $region40: #{cris_forward.1} parent=11 // pred_fallthru
        _
      // Predicated region
      $region41: #{cris_forward.1} parent=11 // pred_check
        %p325 = pneg %p263
      $region42: #{cris_forward.1} parent=11 // pred_check_branch
        %327 = sbr.rel (%p325) target = $region44
      $region43: #{cris_forward.1} parent=11 // pred_region
        _
      $region44: #{cris_forward.1} parent=11 // pred_fallthru
        _
    $region12: #{cris_forward.1} parent=5 // pred_fallthru
      _
    %p328 = scmp.lt.s32.totalorder %s17, 2
    // Predicated region
    $region45: #{cris_forward.1} parent=5 // pred_check
      %p329 = pneg %p328
    $region46: #{cris_forward.1} parent=5 // pred_check_branch
      %331 = sbr.rel (%p329) target = $region48
    $region47: #{cris_forward.1} parent=5 // pred_region
      // Predicated region
      $region49: #{cris_forward.1} parent=47 // pred_check
        %p332 = pneg %p37
      $region50: #{cris_forward.1} parent=47 // pred_check_branch
        %334 = sbr.rel (%p332) target = $region52
      $region51: #{cris_forward.1} parent=47 // pred_region
        %p335 = scmp.lt.s32.totalorder %s17, 1
        %s336 = scalar_select %p335, %s17, 1
        %s337 = smul.addr %s336, 2
        %s338 = smul.addr %s337, 8
        %s339 = scalar_lea.vmem %s0, %s338
      $region52: #{cris_forward.1} parent=47 // pred_fallthru
        _
      // Predicated region
      $region53: #{cris_forward.1} parent=47 // pred_check
        %p340 = pneg %p63
      $region54: #{cris_forward.1} parent=47 // pred_check_branch
        %342 = sbr.rel (%p340) target = $region56
      $region55: #{cris_forward.1} parent=47 // pred_region
        %p343 = scmp.lt.s32.totalorder %s17, 1
        %s344 = scalar_select %p343, %s17, 1
        %s345 = smul.addr %s344, 2
        %s346 = smul.addr %s345, 8
        %s347 = scalar_lea.vmem %s1, %s346
      $region56: #{cris_forward.1} parent=47 // pred_fallthru
        _
      // Predicated region
      $region57: #{cris_forward.1} parent=47 // pred_check
        %p348 = pneg %p89
      $region58: #{cris_forward.1} parent=47 // pred_check_branch
        %350 = sbr.rel (%p348) target = $region60
      $region59: #{cris_forward.1} parent=47 // pred_region
        %p351 = scmp.lt.s32.totalorder %s17, 1
        %s352 = scalar_select %p351, %s17, 1
        %s353 = scalar_lea.vmem %s2, %s352
      $region60: #{cris_forward.1} parent=47 // pred_fallthru
        _
    $region48: #{cris_forward.1} parent=5 // pred_fallthru
      _
    %p354 = scmp.le.s32.totalorder 1, %s17
    %p355 = scmp.lt.s32.totalorder %s17, 3
    %p356 = pnand %p354, %p355
    %p357 = pneg %p356
    // Predicated region
    $region61: #{cris_forward.1} parent=5 // pred_check
      _
    $region62: #{cris_forward.1} parent=5 // pred_check_branch
      %359 = sbr.rel (%p356) target = $region64
    $region63: #{cris_forward.1} parent=5 // pred_region
      %s360 = ssub.s32 %s17, 1
      %p361 = scmp.lt.s32.totalorder %s22, 1
      %s362 = scalar_select %p361, %s22, 1
      %s363 = smul.addr %s362, 2
      %s364 = smul.addr %s363, 8
      %s365 = scalar_lea.vmem %s0, %s364
      %p366 = pneg %p43
      %p367 = pneg %p40
      %p368 = scmp.lt.s32.totalorder %s22, 1
      %s369 = scalar_select %p368, %s22, 1
      %s370 = smul.addr %s369, 2
      %s371 = smul.addr %s370, 8
      %s372 = scalar_lea.vmem %s1, %s371
      %p373 = pneg %p69
      %p374 = pneg %p66
      %p375 = scmp.lt.s32.totalorder %s22, 1
      %s376 = scalar_select %p375, %s22, 1
      %s377 = scalar_lea.vmem %s2, %s376
      %p378 = pneg %p95
      %p379 = pneg %p92
      %p380 = pneg %p116
      %p381 = pneg %p113
      %p382 = pneg %p137
      %p383 = pneg %p134
      %p384 = pneg %p158
      %p385 = pneg %p155
      %p386 = pneg %p179
      %p387 = pneg %p176
      %p388 = pneg %p200
      %p389 = pneg %p197
      %p390 = pneg %p221
      %p391 = pneg %p218
      %p392 = pneg %p242
      %p393 = pneg %p239
      %p394 = pneg %p263
      %p395 = pneg %p260
      %p396 = pneg %p289
      %p397 = pneg %p286
      %p398 = scmp.lt.s32.totalorder %s22, 1
      %s399 = scalar_select %p398, %s22, 1
      %s400 = smul.addr %s399, 8
      %s401 = scalar_lea.vmem %s11, %s400
      %p402 = scmp.lt.s32.totalorder %s22, 1
      %s403 = scalar_select %p402, %s22, 1
      %s404 = smul.addr %s403, 2
      %s405 = smul.addr %s404, 8
      %s406 = scalar_lea.vmem %s0, %s405
      %p407 = scmp.lt.s32.totalorder %s22, 1
      %s408 = scalar_select %p407, %s22, 1
      %s409 = smul.addr %s408, 2
      %s410 = smul.addr %s409, 8
      %s411 = scalar_lea.vmem %s1, %s410
      %p412 = scmp.lt.s32.totalorder %s22, 1
      %s413 = scalar_select %p412, %s22, 1
      %s414 = scalar_lea.vmem %s2, %s413
      %p415 = scmp.lt.s32.totalorder %s22, 1
      %s416 = scalar_select %p415, %s22, 1
      %s417 = smul.addr %s416, 8
      %s418 = scalar_lea.vmem %s11, %s417
      %v419 = vld [vmem:[%s406] sm:$0xff]
      %v420 = vld [vmem:[%s406 + $0x8] sm:$0xff]
      %v421 = vld [vmem:[%s411] sm:$0xff]
      %v422 = vld [vmem:[%s411 + $0x8] sm:$0xff]
      %v423 = vld [vmem:[%s414] sm:$0x1]
      %v424 = vld [vmem:[%s3] sm:$0xff]
      %v425 = vld [vmem:[%s3 + $0x8] sm:$0xff]
      %v426 = vld [vmem:[%s3 + $0x10] sm:$0xff]
      %v427 = vld [vmem:[%s3 + $0x18] sm:$0x7]
      %v428 = vadd.f32 %v419, %v421
      %v429 = vadd.f32 %v420, %v422
      %v430 = vmul.f32 %v428, 0.5
      %v431 = vmul.f32 %v429, 0.5
      %v432 = vld [vmem:[%s4] sm:$0xff]
      %v433 = vld [vmem:[%s4 + $0x8] sm:$0xff]
      %v434 = vld [vmem:[%s4 + $0x10] sm:$0xff]
      %v435 = vld [vmem:[%s4 + $0x18] sm:$0xff]
      %v436 = vld [vmem:[%s5] sm:$0x1]
      %v438 = vperm.slane %v436, 0
      %vm440 = vcmask 261120
      %v442 = vsel %vm440, %v430, 0
      %v445 = vsel %vm440, %v431, 0
      %447 = vmatpush.msra.mxu0 0.0
      %448 = vmatpush.msra.mxu0 0.0
      %449 = vmatpush.msra.mxu0 0.0
      %450 = vmatpush.msra.mxu0 0.0
      %451 = vmatpush.msra.mxu0 0.0
      %452 = vmatpush.msra.mxu0 0.0
      %453 = vmatpush.msra.mxu0 0.0
      %454 = vmatpush.msra.mxu0 0.0
      %455 = vmatpush.msra.mxu0 0.0
      %456 = vmatpush.msra.mxu0 0.0
      %457 = vmatpush.msra.mxu0 0.0
      %458 = vmatpush.msra.mxu0 0.0
      %459 = vmatpush.msra.mxu0 %v435
      %460 = vmatpush.msra.mxu0 %v434
      %461 = vmatpush.msra.mxu0 %v433
      %462 = vmatpush.msra.mxu0 %v432
      %463 = vmatmul.f32.gmra.mxu0 %v442
      %v464 = vpop.f32.mrf.mxu0
      %v465 = vadd.f32 %v438, %v464
      %466 = vmatmul.f32.gmra.mxu0 %v445
      %v467 = vpop.f32.mrf.mxu0
      %v468 = vadd.f32 %v438, %v467
      %469 = vdwg.mxu0
      %v470 = vmax.f32 %v465, 0.0
      %v471 = vmax.f32 %v468, 0.0
      %v472 = vld [vmem:[%s6] sm:$0xff]
      %v473 = vld [vmem:[%s6 + $0x8] sm:$0xff]
      %v474 = vld [vmem:[%s6 + $0x10] sm:$0xff]
      %v475 = vld [vmem:[%s6 + $0x18] sm:$0x7]
      %v476 = vld [vmem:[%s7] sm:$0xff]
      %v477 = vld [vmem:[%s7 + $0x8] sm:$0xff]
      %v478 = vld [vmem:[%s7 + $0x10] sm:$0xff]
      %v479 = vld [vmem:[%s7 + $0x18] sm:$0x7]
      %481 = vset.pattern.permute.xlu0 0
      %482 = vperm.xlu0 %481, %v476
      %v483 = vpop.permute.xlu0 %482
      %486 = vset.pattern.permute.xlu0 0
      %487 = vperm.xlu0 %486, %v477
      %v488 = vpop.permute.xlu0 %487
      %491 = vset.pattern.permute.xlu0 0
      %492 = vperm.xlu0 %491, %v478
      %v493 = vpop.permute.xlu0 %492
      %496 = vset.pattern.permute.xlu0 0
      %497 = vperm.xlu0 %496, %v479
      %v498 = vpop.permute.xlu0 %497
      %vm500 = vcmask 736256
      %v502 = vsel %vm500, %v472, 0
      %v505 = vsel %vm500, %v473, 0
      %v508 = vsel %vm500, %v474, 0
      %v511 = vsel %vm500, %v475, 0
      %v514 = vsel %vm500, %v470, 0
      %v517 = vsel %vm500, %v471, 0
      %519 = vmatpush.xpose.msra.mxu0 0.0
      %520 = vmatpush.xpose.msra.mxu0 0.0
      %521 = vmatpush.xpose.msra.mxu0 0.0
      %522 = vmatpush.xpose.msra.mxu0 0.0
      %523 = vmatpush.xpose.msra.mxu0 0.0
      %524 = vmatpush.xpose.msra.mxu0 0.0
      %525 = vmatpush.xpose.msra.mxu0 0.0
      %526 = vmatpush.xpose.msra.mxu0 0.0
      %527 = vmatpush.xpose.msra.mxu0 0.0
      %528 = vmatpush.xpose.msra.mxu0 0.0
      %529 = vmatpush.xpose.msra.mxu0 0.0
      %530 = vmatpush.xpose.msra.mxu0 0.0
      %531 = vmatpush.xpose.msra.mxu0 0.0
      %532 = vmatpush.xpose.msra.mxu0 0.0
      %533 = vmatpush.xpose.msra.mxu0 %v517
      %534 = vmatpush.xpose.msra.mxu0 %v514
      %535 = vmatmul.f32.gmra.mxu0 %v502
      %v536 = vpop.f32.mrf.mxu0
      %v537 = vadd.f32 %v483, %v536
      %538 = vmatmul.f32.gmra.mxu0 %v505
      %v539 = vpop.f32.mrf.mxu0
      %v540 = vadd.f32 %v488, %v539
      %541 = vmatmul.f32.gmra.mxu0 %v508
      %v542 = vpop.f32.mrf.mxu0
      %v543 = vadd.f32 %v493, %v542
      %544 = vmatmul.f32.gmra.mxu0 %v511
      %v545 = vpop.f32.mrf.mxu0
      %v546 = vadd.f32 %v498, %v545
      %547 = vdwg.mxu0
      %vm548 = vcmask 130048
      %v549 = vsel %vm548, %v537, -inf
      %v550 = vsel %vm548, %v540, -inf
      %v551 = vsel %vm548, %v543, -inf
      %vm552 = vcmask 124928
      %v553 = vsel %vm552, %v546, -inf
      %v554 = vmax.f32 %v549, %v550
      %v555 = vmax.f32 %v551, %v553
      %v556 = vmax.f32 %v554, %v555
      %v557 = vrot.slane %v556, 4
      %v558 = vmax.f32 %v556, %v557
      %v559 = vrot.slane %v558, 2
      %v560 = vmax.f32 %v558, %v559
      %v561 = vrot.slane %v560, 1
      %v562 = vmax.f32 %v560, %v561
      %v563 = vlaneseq
      %v564 = vshrl.u32 %v563, 7
      %v565 = vadd.s32 %v564, 8
      %v566 = vadd.s32 %v564, 16
      %v567 = vadd.s32 %v564, 24
      %vm568 = vcmp.eq.f32.partialorder %v537, %v562
      %vm569 = vcmp.eq.f32.partialorder %v540, %v562
      %vm570 = vcmp.eq.f32.partialorder %v543, %v562
      %vm571 = vcmp.eq.f32.partialorder %v546, %v562
      %v572 = vsel %vm568, %v564, 27
      %v573 = vsel %vm569, %v565, 27
      %v574 = vsel %vm570, %v566, 27
      %v575 = vsel %vm571, %v567, 27
      %v576 = vsel %vm548, %v572, 2147483647
      %v577 = vsel %vm548, %v573, 2147483647
      %v578 = vsel %vm548, %v574, 2147483647
      %v579 = vsel %vm552, %v575, 2147483647
      %vm580 = vcmp.lt.s32.totalorder %v576, %v577
      %v581 = vsel %vm580, %v576, %v577
      %vm582 = vcmp.lt.s32.totalorder %v578, %v579
      %v583 = vsel %vm582, %v578, %v579
      %vm584 = vcmp.lt.s32.totalorder %v581, %v583
      %v585 = vsel %vm584, %v581, %v583
      %v586 = vrot.slane %v585, 4
      %vm587 = vcmp.lt.s32.totalorder %v585, %v586
      %v588 = vsel %vm587, %v585, %v586
      %v589 = vrot.slane %v588, 2
      %vm590 = vcmp.lt.s32.totalorder %v588, %v589
      %v591 = vsel %vm590, %v588, %v589
      %v592 = vrot.slane %v591, 1
      %vm593 = vcmp.lt.s32.totalorder %v591, %v592
      %v594 = vsel %vm593, %v591, %v592
      %vm595 = vcmp.eq.s32.totalorder %v594, %v564
      %vm596 = vcmp.eq.s32.totalorder %v594, %v565
      %vm597 = vcmp.eq.s32.totalorder %v594, %v566
      %vm598 = vcmp.eq.s32.totalorder %v594, %v567
      %v599 = vld [vmem:[%s8] sm:$0xff]
      %v600 = vld [vmem:[%s8 + $0x8] sm:$0xff]
      %v601 = vld [vmem:[%s8 + $0x10] sm:$0xff]
      %v602 = vld [vmem:[%s8 + $0x18] sm:$0xff]
      %v604 = vsel %vm440, %v424, 0
      %v607 = vsel %vm440, %v425, 0
      %v610 = vsel %vm440, %v426, 0
      %v613 = vsel %vm440, %v427, 0
      %615 = vmatpush.msra.mxu0 0.0
      %616 = vmatpush.msra.mxu0 0.0
      %617 = vmatpush.msra.mxu0 0.0
      %618 = vmatpush.msra.mxu0 0.0
      %619 = vmatpush.msra.mxu0 0.0
      %620 = vmatpush.msra.mxu0 0.0
      %621 = vmatpush.msra.mxu0 0.0
      %622 = vmatpush.msra.mxu0 0.0
      %623 = vmatpush.msra.mxu0 0.0
      %624 = vmatpush.msra.mxu0 0.0
      %625 = vmatpush.msra.mxu0 0.0
      %626 = vmatpush.msra.mxu0 0.0
      %627 = vmatpush.msra.mxu0 %v602
      %628 = vmatpush.msra.mxu0 %v601
      %629 = vmatpush.msra.mxu0 %v600
      %630 = vmatpush.msra.mxu0 %v599
      %631 = vmatmul.f32.gmra.mxu0 %v604
      %v632 = vpop.f32.mrf.mxu0
      %v633 = vadd.f32 0.0, %v632
      %634 = vmatmul.f32.gmra.mxu0 %v607
      %v635 = vpop.f32.mrf.mxu0
      %v636 = vadd.f32 0.0, %v635
      %637 = vmatmul.f32.gmra.mxu0 %v610
      %v638 = vpop.f32.mrf.mxu0
      %v639 = vadd.f32 0.0, %v638
      %640 = vmatmul.f32.gmra.mxu0 %v613
      %v641 = vpop.f32.mrf.mxu0
      %v642 = vadd.f32 0.0, %v641
      %643 = vdwg.mxu0
      %v644 = vld [vmem:[%s9] sm:$0xff]
      %v645 = vld [vmem:[%s9 + $0x8] sm:$0xff]
      %v646 = vld [vmem:[%s9 + $0x10] sm:$0xff]
      %v647 = vld [vmem:[%s9 + $0x18] sm:$0xff]
      %648 = vmatpush.msra.mxu0 0.0
      %649 = vmatpush.msra.mxu0 0.0
      %650 = vmatpush.msra.mxu0 0.0
      %651 = vmatpush.msra.mxu0 0.0
      %652 = vmatpush.msra.mxu0 0.0
      %653 = vmatpush.msra.mxu0 0.0
      %654 = vmatpush.msra.mxu0 0.0
      %655 = vmatpush.msra.mxu0 0.0
      %656 = vmatpush.msra.mxu0 0.0
      %657 = vmatpush.msra.mxu0 0.0
      %658 = vmatpush.msra.mxu0 0.0
      %659 = vmatpush.msra.mxu0 0.0
      %660 = vmatpush.msra.mxu0 %v647
      %661 = vmatpush.msra.mxu0 %v646
      %662 = vmatpush.msra.mxu0 %v645
      %663 = vmatpush.msra.mxu0 %v644
      %664 = vmatmul.f32.gmra.mxu0 %v604
      %v665 = vpop.f32.mrf.mxu0
      %v666 = vadd.f32 0.0, %v665
      %667 = vmatmul.f32.gmra.mxu0 %v607
      %v668 = vpop.f32.mrf.mxu0
      %v669 = vadd.f32 0.0, %v668
      %670 = vmatmul.f32.gmra.mxu0 %v610
      %v671 = vpop.f32.mrf.mxu0
      %v672 = vadd.f32 0.0, %v671
      %673 = vmatmul.f32.gmra.mxu0 %v613
      %v674 = vpop.f32.mrf.mxu0
      %v675 = vadd.f32 0.0, %v674
      %676 = vdwg.mxu0
      %v677 = vld [vmem:[%s10] sm:$0xff]
      %v678 = vld [vmem:[%s10 + $0x8] sm:$0xff]
      %v679 = vld [vmem:[%s10 + $0x10] sm:$0xff]
      %v680 = vld [vmem:[%s10 + $0x18] sm:$0xff]
      %681 = vmatpush.msra.mxu0 0.0
      %682 = vmatpush.msra.mxu0 0.0
      %683 = vmatpush.msra.mxu0 0.0
      %684 = vmatpush.msra.mxu0 0.0
      %685 = vmatpush.msra.mxu0 0.0
      %686 = vmatpush.msra.mxu0 0.0
      %687 = vmatpush.msra.mxu0 0.0
      %688 = vmatpush.msra.mxu0 0.0
      %689 = vmatpush.msra.mxu0 0.0
      %690 = vmatpush.msra.mxu0 0.0
      %691 = vmatpush.msra.mxu0 0.0
      %692 = vmatpush.msra.mxu0 0.0
      %693 = vmatpush.msra.mxu0 %v680
      %694 = vmatpush.msra.mxu0 %v679
      %695 = vmatpush.msra.mxu0 %v678
      %696 = vmatpush.msra.mxu0 %v677
      %697 = vmatmul.f32.gmra.mxu0 %v604
      %v698 = vpop.f32.mrf.mxu0
      %v699 = vadd.f32 0.0, %v698
      %700 = vmatmul.f32.gmra.mxu0 %v607
      %v701 = vpop.f32.mrf.mxu0
      %v702 = vadd.f32 0.0, %v701
      %703 = vmatmul.f32.gmra.mxu0 %v610
      %v704 = vpop.f32.mrf.mxu0
      %v705 = vadd.f32 0.0, %v704
      %706 = vmatmul.f32.gmra.mxu0 %v613
      %v707 = vpop.f32.mrf.mxu0
      %v708 = vadd.f32 0.0, %v707
      %709 = vdwg.mxu0
      %v711 = vsel %vm440, %v419, 0
      %v714 = vsel %vm440, %v420, 0
      %716 = vmatpush.msra.mxu0 0.0
      %717 = vmatpush.msra.mxu0 0.0
      %718 = vmatpush.msra.mxu0 0.0
      %719 = vmatpush.msra.mxu0 0.0
      %720 = vmatpush.msra.mxu0 0.0
      %721 = vmatpush.msra.mxu0 0.0
      %722 = vmatpush.msra.mxu0 0.0
      %723 = vmatpush.msra.mxu0 0.0
      %724 = vmatpush.msra.mxu0 0.0
      %725 = vmatpush.msra.mxu0 0.0
      %726 = vmatpush.msra.mxu0 0.0
      %727 = vmatpush.msra.mxu0 0.0
      %728 = vmatpush.msra.mxu0 %v647
      %729 = vmatpush.msra.mxu0 %v646
      %730 = vmatpush.msra.mxu0 %v645
      %731 = vmatpush.msra.mxu0 %v644
      %732 = vmatmul.f32.gmra.mxu0 %v711
      %v733 = vpop.f32.mrf.mxu0
      %v734 = vadd.f32 0.0, %v733
      %735 = vmatmul.f32.gmra.mxu0 %v714
      %v736 = vpop.f32.mrf.mxu0
      %v737 = vadd.f32 0.0, %v736
      %738 = vdwg.mxu0
      %739 = vmatpush.msra.mxu0 0.0
      %740 = vmatpush.msra.mxu0 0.0
      %741 = vmatpush.msra.mxu0 0.0
      %742 = vmatpush.msra.mxu0 0.0
      %743 = vmatpush.msra.mxu0 0.0
      %744 = vmatpush.msra.mxu0 0.0
      %745 = vmatpush.msra.mxu0 0.0
      %746 = vmatpush.msra.mxu0 0.0
      %747 = vmatpush.msra.mxu0 0.0
      %748 = vmatpush.msra.mxu0 0.0
      %749 = vmatpush.msra.mxu0 0.0
      %750 = vmatpush.msra.mxu0 0.0
      %751 = vmatpush.msra.mxu0 %v680
      %752 = vmatpush.msra.mxu0 %v679
      %753 = vmatpush.msra.mxu0 %v678
      %754 = vmatpush.msra.mxu0 %v677
      %755 = vmatmul.f32.gmra.mxu0 %v711
      %v756 = vpop.f32.mrf.mxu0
      %v757 = vadd.f32 0.0, %v756
      %758 = vmatmul.f32.gmra.mxu0 %v714
      %v759 = vpop.f32.mrf.mxu0
      %v760 = vadd.f32 0.0, %v759
      %761 = vdwg.mxu0
      %v763 = vsel %vm440, %v633, 0
      %v766 = vsel %vm440, %v636, 0
      %v769 = vsel %vm440, %v639, 0
      %v772 = vsel %vm440, %v642, 0
      %v775 = vsel %vm440, %v666, 0
      %v778 = vsel %vm440, %v669, 0
      %v781 = vsel %vm440, %v672, 0
      %v784 = vsel %vm440, %v675, 0
      %786 = vmatpush.xpose.msra.mxu0 0.0
      %787 = vmatpush.xpose.msra.mxu0 0.0
      %788 = vmatpush.xpose.msra.mxu0 0.0
      %789 = vmatpush.xpose.msra.mxu0 0.0
      %790 = vmatpush.xpose.msra.mxu0 0.0
      %791 = vmatpush.xpose.msra.mxu0 0.0
      %792 = vmatpush.xpose.msra.mxu0 0.0
      %793 = vmatpush.xpose.msra.mxu0 0.0
      %794 = vmatpush.xpose.msra.mxu0 0.0
      %795 = vmatpush.xpose.msra.mxu0 0.0
      %796 = vmatpush.xpose.msra.mxu0 0.0
      %797 = vmatpush.xpose.msra.mxu0 0.0
      %798 = vmatpush.xpose.msra.mxu0 %v784
      %799 = vmatpush.xpose.msra.mxu0 %v781
      %800 = vmatpush.xpose.msra.mxu0 %v778
      %801 = vmatpush.xpose.msra.mxu0 %v775
      %802 = vmatmul.f32.gmra.mxu0 %v763
      %v803 = vpop.f32.mrf.mxu0
      %v804 = vadd.f32 0.0, %v803
      %805 = vmatmul.f32.gmra.mxu0 %v766
      %v806 = vpop.f32.mrf.mxu0
      %v807 = vadd.f32 0.0, %v806
      %808 = vmatmul.f32.gmra.mxu0 %v769
      %v809 = vpop.f32.mrf.mxu0
      %v810 = vadd.f32 0.0, %v809
      %811 = vmatmul.f32.gmra.mxu0 %v772
      %v812 = vpop.f32.mrf.mxu0
      %v813 = vadd.f32 0.0, %v812
      %814 = vdwg.mxu0
      %v815 = vmul.f32 %v804, 0.17677669
      %v816 = vmul.f32 %v807, 0.17677669
      %v817 = vmul.f32 %v810, 0.17677669
      %v818 = vmul.f32 %v813, 0.17677669
      %v820 = vsel %vm440, %v734, 0
      %v823 = vsel %vm440, %v737, 0
      %825 = vmatpush.xpose.msra.mxu0 0.0
      %826 = vmatpush.xpose.msra.mxu0 0.0
      %827 = vmatpush.xpose.msra.mxu0 0.0
      %828 = vmatpush.xpose.msra.mxu0 0.0
      %829 = vmatpush.xpose.msra.mxu0 0.0
      %830 = vmatpush.xpose.msra.mxu0 0.0
      %831 = vmatpush.xpose.msra.mxu0 0.0
      %832 = vmatpush.xpose.msra.mxu0 0.0
      %833 = vmatpush.xpose.msra.mxu0 0.0
      %834 = vmatpush.xpose.msra.mxu0 0.0
      %835 = vmatpush.xpose.msra.mxu0 0.0
      %836 = vmatpush.xpose.msra.mxu0 0.0
      %837 = vmatpush.xpose.msra.mxu0 0.0
      %838 = vmatpush.xpose.msra.mxu0 0.0
      %839 = vmatpush.xpose.msra.mxu0 %v823
      %840 = vmatpush.xpose.msra.mxu0 %v820
      %841 = vmatmul.f32.gmra.mxu0 %v763
      %v842 = vpop.f32.mrf.mxu0
      %v843 = vadd.f32 0.0, %v842
      %844 = vmatmul.f32.gmra.mxu0 %v766
      %v845 = vpop.f32.mrf.mxu0
      %v846 = vadd.f32 0.0, %v845
      %847 = vmatmul.f32.gmra.mxu0 %v769
      %v848 = vpop.f32.mrf.mxu0
      %v849 = vadd.f32 0.0, %v848
      %850 = vmatmul.f32.gmra.mxu0 %v772
      %v851 = vpop.f32.mrf.mxu0
      %v852 = vadd.f32 0.0, %v851
      %853 = vdwg.mxu0
      %v854 = vmul.f32 %v843, 0.17677669
      %v855 = vmul.f32 %v846, 0.17677669
      %v856 = vmul.f32 %v849, 0.17677669
      %v857 = vmul.f32 %v852, 0.17677669
      %v858 = vlaneseq
      %v859 = vand.u32 %v858, 127
      %vm860 = vcmp.eq.s32.totalorder %v564, %v859
      %vm861 = vcmp.eq.s32.totalorder %v565, %v859
      %vm862 = vcmp.eq.s32.totalorder %v566, %v859
      %vm863 = vcmp.eq.s32.totalorder %v567, %v859
      %v864 = vsel %vm860, %v815, -1e+30
      %v865 = vsel %vm861, %v816, -1e+30
      %v866 = vsel %vm862, %v817, -1e+30
      %v867 = vsel %vm863, %v818, -1e+30
      %v868 = vsel %vm595, %v854, -1e+30
      %v869 = vsel %vm596, %v855, -1e+30
      %v870 = vsel %vm597, %v856, -1e+30
      %v871 = vsel %vm598, %v857, -1e+30
      %vm872 = vcmask 220160
      %v873 = vsel %vm872, %v864, -inf
      %874 = vmax.xlane.f32.xlu0 %v873
      %v875 = vpop.xlane.xlu0 %874
      %v876 = vsel %vm872, %v865, -inf
      %877 = vmax.xlane.f32.xlu0 %v876
      %v878 = vpop.xlane.xlu0 %877
      %v879 = vsel %vm872, %v866, -inf
      %880 = vmax.xlane.f32.xlu0 %v879
      %v881 = vpop.xlane.xlu0 %880
      %vm882 = vcmask 215040
      %v883 = vsel %vm882, %v867, -inf
      %884 = vmax.xlane.f32.xlu0 %v883
      %v885 = vpop.xlane.xlu0 %884
      %v886 = vsel %vm548, %v868, -inf
      %887 = vmax.xlane.f32.xlu0 %v886
      %v888 = vpop.xlane.xlu0 %887
      %v889 = vsel %vm548, %v869, -inf
      %890 = vmax.xlane.f32.xlu0 %v889
      %v891 = vpop.xlane.xlu0 %890
      %v892 = vsel %vm548, %v870, -inf
      %893 = vmax.xlane.f32.xlu0 %v892
      %v894 = vpop.xlane.xlu0 %893
      %v895 = vsel %vm552, %v871, -inf
      %896 = vmax.xlane.f32.xlu0 %v895
      %v897 = vpop.xlane.xlu0 %896
      %v898 = vmax.f32 %v875, %v888
      %v899 = vmax.f32 %v878, %v891
      %v900 = vmax.f32 %v881, %v894
      %v901 = vmax.f32 %v885, %v897
      %v902 = vsub.f32 %v864, %v898
      %v903 = vsub.f32 %v865, %v899
      %v904 = vsub.f32 %v866, %v900
      %v905 = vsub.f32 %v867, %v901
      %v906 = vmul.f32 %v902, 1.442695
      %v907 = vpow.pop %v906
      %v908 = vmul.f32 %v903, 1.442695
      %v909 = vpow.pop %v908
      %v910 = vmul.f32 %v904, 1.442695
      %v911 = vpow.pop %v910
      %v912 = vmul.f32 %v905, 1.442695
      %v913 = vpow.pop %v912
      %v914 = vsub.f32 %v868, %v898
      %v915 = vsub.f32 %v869, %v899
      %v916 = vsub.f32 %v870, %v900
      %v917 = vsub.f32 %v871, %v901
      %v918 = vmul.f32 %v914, 1.442695
      %v919 = vpow.pop %v918
      %v920 = vmul.f32 %v915, 1.442695
      %v921 = vpow.pop %v920
      %v922 = vmul.f32 %v916, 1.442695
      %v923 = vpow.pop %v922
      %v924 = vmul.f32 %v917, 1.442695
      %v925 = vpow.pop %v924
      %v926 = vsel %vm872, %v907, 0.0
      %927 = vadd.xlane.f32.xlu0 %v926
      %v928 = vpop.xlane.xlu0 %927
      %v929 = vsel %vm872, %v909, 0.0
      %930 = vadd.xlane.f32.xlu0 %v929
      %v931 = vpop.xlane.xlu0 %930
      %v932 = vsel %vm872, %v911, 0.0
      %933 = vadd.xlane.f32.xlu0 %v932
      %v934 = vpop.xlane.xlu0 %933
      %v935 = vsel %vm882, %v913, 0.0
      %936 = vadd.xlane.f32.xlu0 %v935
      %v937 = vpop.xlane.xlu0 %936
      %v938 = vsel %vm548, %v919, 0.0
      %939 = vadd.xlane.f32.xlu0 %v938
      %v940 = vpop.xlane.xlu0 %939
      %v941 = vsel %vm548, %v921, 0.0
      %942 = vadd.xlane.f32.xlu0 %v941
      %v943 = vpop.xlane.xlu0 %942
      %v944 = vsel %vm548, %v923, 0.0
      %945 = vadd.xlane.f32.xlu0 %v944
      %v946 = vpop.xlane.xlu0 %945
      %v947 = vsel %vm552, %v925, 0.0
      %948 = vadd.xlane.f32.xlu0 %v947
      %v949 = vpop.xlane.xlu0 %948
      %v950 = vadd.f32 %v928, %v940
      %v951 = vadd.f32 %v931, %v943
      %v952 = vadd.f32 %v934, %v946
      %v953 = vadd.f32 %v937, %v949
      %v954 = vrcp.pop %v950
      %v955 = vrcp.pop %v951
      %v956 = vrcp.pop %v952
      %v957 = vrcp.pop %v953
      %v959 = vsel %vm548, %v919, 0
      %v962 = vsel %vm548, %v921, 0
      %v965 = vsel %vm548, %v923, 0
      %v968 = vsel %vm548, %v925, 0
      %970 = vmatpush.msra.mxu0 0.0
      %971 = vmatpush.msra.mxu0 0.0
      %972 = vmatpush.msra.mxu0 0.0
      %973 = vmatpush.msra.mxu0 0.0
      %974 = vmatpush.msra.mxu0 0.0
      %975 = vmatpush.msra.mxu0 0.0
      %976 = vmatpush.msra.mxu0 0.0
      %977 = vmatpush.msra.mxu0 0.0
      %978 = vmatpush.msra.mxu0 0.0
      %979 = vmatpush.msra.mxu0 0.0
      %980 = vmatpush.msra.mxu0 0.0
      %981 = vmatpush.msra.mxu0 0.0
      %982 = vmatpush.msra.mxu0 0.0
      %983 = vmatpush.msra.mxu0 0.0
      %984 = vmatpush.msra.mxu0 %v760
      %985 = vmatpush.msra.mxu0 %v757
      %986 = vmatmul.f32.gmra.mxu0 %v959
      %v987 = vpop.f32.mrf.mxu0
      %v988 = vadd.f32 0.0, %v987
      %989 = vmatmul.f32.gmra.mxu0 %v962
      %v990 = vpop.f32.mrf.mxu0
      %v991 = vadd.f32 0.0, %v990
      %992 = vmatmul.f32.gmra.mxu0 %v965
      %v993 = vpop.f32.mrf.mxu0
      %v994 = vadd.f32 0.0, %v993
      %995 = vmatmul.f32.gmra.mxu0 %v968
      %v996 = vpop.f32.mrf.mxu0
      %v997 = vadd.f32 0.0, %v996
      %998 = vdwg.mxu0
      %v1000 = vsel %vm872, %v907, 0
      %v1003 = vsel %vm872, %v909, 0
      %v1006 = vsel %vm872, %v911, 0
      %v1009 = vsel %vm872, %v913, 0
      %vm1011 = vcmask 1042432
      %v1013 = vsel %vm1011, %v708, 0
      %1015 = vmatpush.msra.mxu0 0.0
      %1016 = vmatpush.msra.mxu0 0.0
      %1017 = vmatpush.msra.mxu0 0.0
      %1018 = vmatpush.msra.mxu0 0.0
      %1019 = vmatpush.msra.mxu0 0.0
      %1020 = vmatpush.msra.mxu0 0.0
      %1021 = vmatpush.msra.mxu0 0.0
      %1022 = vmatpush.msra.mxu0 0.0
      %1023 = vmatpush.msra.mxu0 0.0
      %1024 = vmatpush.msra.mxu0 0.0
      %1025 = vmatpush.msra.mxu0 0.0
      %1026 = vmatpush.msra.mxu0 0.0
      %1027 = vmatpush.msra.mxu0 %v1013
      %1028 = vmatpush.msra.mxu0 %v705
      %1029 = vmatpush.msra.mxu0 %v702
      %1030 = vmatpush.msra.mxu0 %v699
      %1031 = vmatmul.f32.gmra.mxu0 %v1000
      %v1032 = vpop.f32.mrf.mxu0
      %v1033 = vadd.f32 %v988, %v1032
      %1034 = vmatmul.f32.gmra.mxu0 %v1003
      %v1035 = vpop.f32.mrf.mxu0
      %v1036 = vadd.f32 %v991, %v1035
      %1037 = vmatmul.f32.gmra.mxu0 %v1006
      %v1038 = vpop.f32.mrf.mxu0
      %v1039 = vadd.f32 %v994, %v1038
      %1040 = vmatmul.f32.gmra.mxu0 %v1009
      %v1041 = vpop.f32.mrf.mxu0
      %v1042 = vadd.f32 %v997, %v1041
      %1043 = vdwg.mxu0
      %v1044 = vmul.f32 %v1033, %v954
      %v1045 = vmul.f32 %v1036, %v955
      %v1046 = vmul.f32 %v1039, %v956
      %v1047 = vmul.f32 %v1042, %v957
      %v1048 = vmul.f32 %v423, %v423
      %vm1049 = vcmask 253952
      %v1050 = vsel %vm1049, %v1048, 0.0
      %1051 = vadd.xlane.f32.xlu0 %v1050
      %v1052 = vpop.xlane.xlu0 %1051
      %v1053 = vrsqrt.pop %v1052
      %v1054 = vmul.f32 %v1053, %v1052
      %v1055 = vmul.f32 %v1054, %v1053
      %v1056 = vmul.f32 0.5, %v1055
      %v1057 = vsub.f32 1.5, %v1056
      %v1058 = vmul.f32 %v1053, %v1057
      %vm1059 = vweird.f32 %v1052
      %vm1060 = vweird.f32 %v1053
      %vm1061 = vmor %vm1059, %vm1060
      %v1062 = vsel %vm1061, %v1053, %v1058
      %v1063 = vmul.f32 %v423, %v1062
      %v1064 = vmul.f32 %v1044, %v1044
      %v1065 = vmul.f32 %v1045, %v1045
      %v1066 = vmul.f32 %v1046, %v1046
      %v1067 = vmul.f32 %v1047, %v1047
      %v1068 = vsel %vm440, %v1064, 0.0
      %1069 = vadd.xlane.f32.xlu0 %v1068
      %v1070 = vpop.xlane.xlu0 %1069
      %v1071 = vsel %vm440, %v1065, 0.0
      %1072 = vadd.xlane.f32.xlu0 %v1071
      %v1073 = vpop.xlane.xlu0 %1072
      %v1074 = vsel %vm440, %v1066, 0.0
      %1075 = vadd.xlane.f32.xlu0 %v1074
      %v1076 = vpop.xlane.xlu0 %1075
      %vm1077 = vcmask 256000
      %v1078 = vsel %vm1077, %v1067, 0.0
      %1079 = vadd.xlane.f32.xlu0 %v1078
      %v1080 = vpop.xlane.xlu0 %1079
      %v1081 = vmax.f32 %v1070, 1e-24
      %v1082 = vmax.f32 %v1073, 1e-24
      %v1083 = vmax.f32 %v1076, 1e-24
      %v1084 = vmax.f32 %v1080, 1e-24
      %v1085 = vrsqrt.pop %v1081
      %v1086 = vmul.f32 %v1085, %v1081
      %v1087 = vmul.f32 %v1086, %v1085
      %v1088 = vmul.f32 0.5, %v1087
      %v1089 = vsub.f32 1.5, %v1088
      %v1090 = vmul.f32 %v1085, %v1089
      %vm1091 = vweird.f32 %v1081
      %vm1092 = vweird.f32 %v1085
      %vm1093 = vmor %vm1091, %vm1092
      %v1094 = vsel %vm1093, %v1085, %v1090
      %v1095 = vrsqrt.pop %v1082
      %v1096 = vmul.f32 %v1095, %v1082
      %v1097 = vmul.f32 %v1096, %v1095
      %v1098 = vmul.f32 0.5, %v1097
      %v1099 = vsub.f32 1.5, %v1098
      %v1100 = vmul.f32 %v1095, %v1099
      %vm1101 = vweird.f32 %v1082
      %vm1102 = vweird.f32 %v1095
      %vm1103 = vmor %vm1101, %vm1102
      %v1104 = vsel %vm1103, %v1095, %v1100
      %v1105 = vrsqrt.pop %v1083
      %v1106 = vmul.f32 %v1105, %v1083
      %v1107 = vmul.f32 %v1106, %v1105
      %v1108 = vmul.f32 0.5, %v1107
      %v1109 = vsub.f32 1.5, %v1108
      %v1110 = vmul.f32 %v1105, %v1109
      %vm1111 = vweird.f32 %v1083
      %vm1112 = vweird.f32 %v1105
      %vm1113 = vmor %vm1111, %vm1112
      %v1114 = vsel %vm1113, %v1105, %v1110
      %v1115 = vrsqrt.pop %v1084
      %v1116 = vmul.f32 %v1115, %v1084
      %v1117 = vmul.f32 %v1116, %v1115
      %v1118 = vmul.f32 0.5, %v1117
      %v1119 = vsub.f32 1.5, %v1118
      %v1120 = vmul.f32 %v1115, %v1119
      %vm1121 = vweird.f32 %v1084
      %vm1122 = vweird.f32 %v1115
      %vm1123 = vmor %vm1121, %vm1122
      %v1124 = vsel %vm1123, %v1115, %v1120
      %v1125 = vmul.f32 %v1044, %v1094
      %v1126 = vmul.f32 %v1045, %v1104
      %v1127 = vmul.f32 %v1046, %v1114
      %v1128 = vmul.f32 %v1047, %v1124
      %v1130 = vsel %vm440, %v1063, 0
      %v1133 = vsel %vm440, %v1125, 0
      %v1136 = vsel %vm440, %v1126, 0
      %v1139 = vsel %vm440, %v1127, 0
      %v1142 = vsel %vm440, %v1128, 0
      %1144 = vmatpush.xpose.msra.mxu0 0.0
      %1145 = vmatpush.xpose.msra.mxu0 0.0
      %1146 = vmatpush.xpose.msra.mxu0 0.0
      %1147 = vmatpush.xpose.msra.mxu0 0.0
      %1148 = vmatpush.xpose.msra.mxu0 0.0
      %1149 = vmatpush.xpose.msra.mxu0 0.0
      %1150 = vmatpush.xpose.msra.mxu0 0.0
      %1151 = vmatpush.xpose.msra.mxu0 0.0
      %1152 = vmatpush.xpose.msra.mxu0 0.0
      %1153 = vmatpush.xpose.msra.mxu0 0.0
      %1154 = vmatpush.xpose.msra.mxu0 0.0
      %1155 = vmatpush.xpose.msra.mxu0 0.0
      %1156 = vmatpush.xpose.msra.mxu0 %v1142
      %1157 = vmatpush.xpose.msra.mxu0 %v1139
      %1158 = vmatpush.xpose.msra.mxu0 %v1136
      %1159 = vmatpush.xpose.msra.mxu0 %v1133
      %1160 = vmatmul.f32.gmra.mxu0 %v1130
      %v1161 = vpop.f32.mrf.mxu0
      %v1162 = vadd.f32 0.0, %v1161
      %1163 = vdwg.mxu0
      %v1164 = vsel %vm595, 1, 0
      %v1165 = vsel %vm596, 1, 0
      %v1166 = vsel %vm597, 1, 0
      %v1167 = vsel %vm598, 1, 0
      %v1168 = vcvt.s32.f32 %v1164
      %v1169 = vcvt.s32.f32 %v1165
      %v1170 = vcvt.s32.f32 %v1166
      %v1171 = vcvt.s32.f32 %v1167
      %v1173 = vsel %vm872, %v1162, 0
      %v1176 = vsel %vm1011, %v1171, 0
      %1178 = vmatpush.msra.mxu0 0.0
      %1179 = vmatpush.msra.mxu0 0.0
      %1180 = vmatpush.msra.mxu0 0.0
      %1181 = vmatpush.msra.mxu0 0.0
      %1182 = vmatpush.msra.mxu0 0.0
      %1183 = vmatpush.msra.mxu0 0.0
      %1184 = vmatpush.msra.mxu0 0.0
      %1185 = vmatpush.msra.mxu0 0.0
      %1186 = vmatpush.msra.mxu0 0.0
      %1187 = vmatpush.msra.mxu0 0.0
      %1188 = vmatpush.msra.mxu0 0.0
      %1189 = vmatpush.msra.mxu0 0.0
      %1190 = vmatpush.msra.mxu0 %v1176
      %1191 = vmatpush.msra.mxu0 %v1170
      %1192 = vmatpush.msra.mxu0 %v1169
      %1193 = vmatpush.msra.mxu0 %v1168
      %1194 = vmatmul.f32.gmra.mxu0 %v1173
      %v1195 = vpop.f32.mrf.mxu0
      %v1196 = vadd.f32 0.0, %v1195
      %1197 = vdwg.mxu0
      %v1198 = vadd.s32 %v859, 128
      %v1199 = vadd.s32 %v859, 256
      %v1200 = vadd.s32 %v859, 384
      %v1201 = vadd.s32 %v859, 512
      %v1202 = vadd.s32 %v859, 640
      %v1203 = vadd.s32 %v859, 768
      %v1204 = vadd.s32 %v859, 896
      %v1205 = vshra.s32 %v859, 5
      %v1206 = vshra.s32 %v1198, 5
      %v1207 = vshra.s32 %v1199, 5
      %v1208 = vshra.s32 %v1200, 5
      %v1209 = vshra.s32 %v1201, 5
      %v1210 = vshra.s32 %v1202, 5
      %v1211 = vshra.s32 %v1203, 5
      %v1212 = vshra.s32 %v1204, 5
      %v1213 = vand.u32 %v859, 31
      %v1214 = vand.u32 %v1198, 31
      %v1215 = vand.u32 %v1199, 31
      %v1216 = vand.u32 %v1200, 31
      %v1217 = vand.u32 %v1201, 31
      %v1218 = vand.u32 %v1202, 31
      %v1219 = vand.u32 %v1203, 31
      %v1220 = vand.u32 %v1204, 31
      %v1221 = vshra.s32 %v1205, 3
      %v1222 = vshra.s32 %v1206, 3
      %v1223 = vshra.s32 %v1207, 3
      %v1224 = vshra.s32 %v1208, 3
      %v1225 = vshra.s32 %v1209, 3
      %v1226 = vshra.s32 %v1210, 3
      %v1227 = vshra.s32 %v1211, 3
      %v1228 = vshra.s32 %v1212, 3
      %v1229 = vmul.u32 %v1221, 4
      %v1230 = vmul.u32 %v1222, 4
      %v1231 = vmul.u32 %v1223, 4
      %v1232 = vmul.u32 %v1224, 4
      %v1233 = vmul.u32 %v1225, 4
      %v1234 = vmul.u32 %v1226, 4
      %v1235 = vmul.u32 %v1227, 4
      %v1236 = vmul.u32 %v1228, 4
      %v1237 = vshra.s32 %v1213, 3
      %v1238 = vshra.s32 %v1214, 3
      %v1239 = vshra.s32 %v1215, 3
      %v1240 = vshra.s32 %v1216, 3
      %v1241 = vshra.s32 %v1217, 3
      %v1242 = vshra.s32 %v1218, 3
      %v1243 = vshra.s32 %v1219, 3
      %v1244 = vshra.s32 %v1220, 3
      %v1245 = vadd.s32 %v1229, %v1237
      %v1246 = vadd.s32 %v1230, %v1238
      %v1247 = vadd.s32 %v1231, %v1239
      %v1248 = vadd.s32 %v1232, %v1240
      %v1249 = vadd.s32 %v1233, %v1241
      %v1250 = vadd.s32 %v1234, %v1242
      %v1251 = vadd.s32 %v1235, %v1243
      %v1252 = vadd.s32 %v1236, %v1244
      %vm1253 = vcmp.eq.s32.totalorder %v564, %v1245
      %vm1254 = vcmp.eq.s32.totalorder %v564, %v1246
      %vm1255 = vcmp.eq.s32.totalorder %v564, %v1247
      %vm1256 = vcmp.eq.s32.totalorder %v564, %v1248
      %vm1257 = vcmp.eq.s32.totalorder %v564, %v1249
      %vm1258 = vcmp.eq.s32.totalorder %v564, %v1250
      %vm1259 = vcmp.eq.s32.totalorder %v564, %v1251
      %vm1260 = vcmp.eq.s32.totalorder %v564, %v1252
      %vm1261 = vcmp.eq.s32.totalorder %v565, %v1245
      %vm1262 = vcmp.eq.s32.totalorder %v565, %v1246
      %vm1263 = vcmp.eq.s32.totalorder %v565, %v1247
      %vm1264 = vcmp.eq.s32.totalorder %v565, %v1248
      %vm1265 = vcmp.eq.s32.totalorder %v565, %v1249
      %vm1266 = vcmp.eq.s32.totalorder %v565, %v1250
      %vm1267 = vcmp.eq.s32.totalorder %v565, %v1251
      %vm1268 = vcmp.eq.s32.totalorder %v565, %v1252
      %v1269 = vsel %vm1253, 1, 0
      %v1270 = vsel %vm1254, 1, 0
      %v1271 = vsel %vm1255, 1, 0
      %v1272 = vsel %vm1256, 1, 0
      %v1273 = vsel %vm1257, 1, 0
      %v1274 = vsel %vm1258, 1, 0
      %v1275 = vsel %vm1259, 1, 0
      %v1276 = vsel %vm1260, 1, 0
      %v1277 = vsel %vm1261, 1, 0
      %v1278 = vsel %vm1262, 1, 0
      %v1279 = vsel %vm1263, 1, 0
      %v1280 = vsel %vm1264, 1, 0
      %v1281 = vsel %vm1265, 1, 0
      %v1282 = vsel %vm1266, 1, 0
      %v1283 = vsel %vm1267, 1, 0
      %v1284 = vsel %vm1268, 1, 0
      %v1285 = vcvt.s32.f32 %v1269
      %v1286 = vcvt.s32.f32 %v1270
      %v1287 = vcvt.s32.f32 %v1271
      %v1288 = vcvt.s32.f32 %v1272
      %v1289 = vcvt.s32.f32 %v1273
      %v1290 = vcvt.s32.f32 %v1274
      %v1291 = vcvt.s32.f32 %v1275
      %v1292 = vcvt.s32.f32 %v1276
      %v1293 = vcvt.s32.f32 %v1277
      %v1294 = vcvt.s32.f32 %v1278
      %v1295 = vcvt.s32.f32 %v1279
      %v1296 = vcvt.s32.f32 %v1280
      %v1297 = vcvt.s32.f32 %v1281
      %v1298 = vcvt.s32.f32 %v1282
      %v1299 = vcvt.s32.f32 %v1283
      %v1300 = vcvt.s32.f32 %v1284
      %v1302 = vsel %vm548, %v1196, 0
      %1304 = vmatpush.msra.mxu0 0.0
      %1305 = vmatpush.msra.mxu0 0.0
      %1306 = vmatpush.msra.mxu0 0.0
      %1307 = vmatpush.msra.mxu0 0.0
      %1308 = vmatpush.msra.mxu0 0.0
      %1309 = vmatpush.msra.mxu0 0.0
      %1310 = vmatpush.msra.mxu0 0.0
      %1311 = vmatpush.msra.mxu0 0.0
      %1312 = vmatpush.msra.mxu0 0.0
      %1313 = vmatpush.msra.mxu0 0.0
      %1314 = vmatpush.msra.mxu0 0.0
      %1315 = vmatpush.msra.mxu0 0.0
      %1316 = vmatpush.msra.mxu0 0.0
      %1317 = vmatpush.msra.mxu0 0.0
      %1318 = vmatpush.msra.mxu0 %v1293
      %1319 = vmatpush.msra.mxu0 %v1285
      %1320 = vmatmul.f32.gmra.mxu0 %v1302
      %v1321 = vpop.f32.mrf.mxu0
      %v1322 = vadd.f32 0.0, %v1321
      %1323 = vdwg.mxu0
      %1324 = vmatpush.msra.mxu0 0.0
      %1325 = vmatpush.msra.mxu0 0.0
      %1326 = vmatpush.msra.mxu0 0.0
      %1327 = vmatpush.msra.mxu0 0.0
      %1328 = vmatpush.msra.mxu0 0.0
      %1329 = vmatpush.msra.mxu0 0.0
      %1330 = vmatpush.msra.mxu0 0.0
      %1331 = vmatpush.msra.mxu0 0.0
      %1332 = vmatpush.msra.mxu0 0.0
      %1333 = vmatpush.msra.mxu0 0.0
      %1334 = vmatpush.msra.mxu0 0.0
      %1335 = vmatpush.msra.mxu0 0.0
      %1336 = vmatpush.msra.mxu0 0.0
      %1337 = vmatpush.msra.mxu0 0.0
      %1338 = vmatpush.msra.mxu0 %v1294
      %1339 = vmatpush.msra.mxu0 %v1286
      %1340 = vmatmul.f32.gmra.mxu0 %v1302
      %v1341 = vpop.f32.mrf.mxu0
      %v1342 = vadd.f32 0.0, %v1341
      %1343 = vdwg.mxu0
      %1344 = vmatpush.msra.mxu0 0.0
      %1345 = vmatpush.msra.mxu0 0.0
      %1346 = vmatpush.msra.mxu0 0.0
      %1347 = vmatpush.msra.mxu0 0.0
      %1348 = vmatpush.msra.mxu0 0.0
      %1349 = vmatpush.msra.mxu0 0.0
      %1350 = vmatpush.msra.mxu0 0.0
      %1351 = vmatpush.msra.mxu0 0.0
      %1352 = vmatpush.msra.mxu0 0.0
      %1353 = vmatpush.msra.mxu0 0.0
      %1354 = vmatpush.msra.mxu0 0.0
      %1355 = vmatpush.msra.mxu0 0.0
      %1356 = vmatpush.msra.mxu0 0.0
      %1357 = vmatpush.msra.mxu0 0.0
      %1358 = vmatpush.msra.mxu0 %v1295
      %1359 = vmatpush.msra.mxu0 %v1287
      %1360 = vmatmul.f32.gmra.mxu0 %v1302
      %v1361 = vpop.f32.mrf.mxu0
      %v1362 = vadd.f32 0.0, %v1361
      %1363 = vdwg.mxu0
      %1364 = vmatpush.msra.mxu0 0.0
      %1365 = vmatpush.msra.mxu0 0.0
      %1366 = vmatpush.msra.mxu0 0.0
      %1367 = vmatpush.msra.mxu0 0.0
      %1368 = vmatpush.msra.mxu0 0.0
      %1369 = vmatpush.msra.mxu0 0.0
      %1370 = vmatpush.msra.mxu0 0.0
      %1371 = vmatpush.msra.mxu0 0.0
      %1372 = vmatpush.msra.mxu0 0.0
      %1373 = vmatpush.msra.mxu0 0.0
      %1374 = vmatpush.msra.mxu0 0.0
      %1375 = vmatpush.msra.mxu0 0.0
      %1376 = vmatpush.msra.mxu0 0.0
      %1377 = vmatpush.msra.mxu0 0.0
      %1378 = vmatpush.msra.mxu0 %v1296
      %1379 = vmatpush.msra.mxu0 %v1288
      %1380 = vmatmul.f32.gmra.mxu0 %v1302
      %v1381 = vpop.f32.mrf.mxu0
      %v1382 = vadd.f32 0.0, %v1381
      %1383 = vdwg.mxu0
      %1384 = vmatpush.msra.mxu0 0.0
      %1385 = vmatpush.msra.mxu0 0.0
      %1386 = vmatpush.msra.mxu0 0.0
      %1387 = vmatpush.msra.mxu0 0.0
      %1388 = vmatpush.msra.mxu0 0.0
      %1389 = vmatpush.msra.mxu0 0.0
      %1390 = vmatpush.msra.mxu0 0.0
      %1391 = vmatpush.msra.mxu0 0.0
      %1392 = vmatpush.msra.mxu0 0.0
      %1393 = vmatpush.msra.mxu0 0.0
      %1394 = vmatpush.msra.mxu0 0.0
      %1395 = vmatpush.msra.mxu0 0.0
      %1396 = vmatpush.msra.mxu0 0.0
      %1397 = vmatpush.msra.mxu0 0.0
      %1398 = vmatpush.msra.mxu0 %v1297
      %1399 = vmatpush.msra.mxu0 %v1289
      %1400 = vmatmul.f32.gmra.mxu0 %v1302
      %v1401 = vpop.f32.mrf.mxu0
      %v1402 = vadd.f32 0.0, %v1401
      %1403 = vdwg.mxu0
      %1404 = vmatpush.msra.mxu0 0.0
      %1405 = vmatpush.msra.mxu0 0.0
      %1406 = vmatpush.msra.mxu0 0.0
      %1407 = vmatpush.msra.mxu0 0.0
      %1408 = vmatpush.msra.mxu0 0.0
      %1409 = vmatpush.msra.mxu0 0.0
      %1410 = vmatpush.msra.mxu0 0.0
      %1411 = vmatpush.msra.mxu0 0.0
      %1412 = vmatpush.msra.mxu0 0.0
      %1413 = vmatpush.msra.mxu0 0.0
      %1414 = vmatpush.msra.mxu0 0.0
      %1415 = vmatpush.msra.mxu0 0.0
      %1416 = vmatpush.msra.mxu0 0.0
      %1417 = vmatpush.msra.mxu0 0.0
      %1418 = vmatpush.msra.mxu0 %v1298
      %1419 = vmatpush.msra.mxu0 %v1290
      %1420 = vmatmul.f32.gmra.mxu0 %v1302
      %v1421 = vpop.f32.mrf.mxu0
      %v1422 = vadd.f32 0.0, %v1421
      %1423 = vdwg.mxu0
      %1424 = vmatpush.msra.mxu0 0.0
      %1425 = vmatpush.msra.mxu0 0.0
      %1426 = vmatpush.msra.mxu0 0.0
      %1427 = vmatpush.msra.mxu0 0.0
      %1428 = vmatpush.msra.mxu0 0.0
      %1429 = vmatpush.msra.mxu0 0.0
      %1430 = vmatpush.msra.mxu0 0.0
      %1431 = vmatpush.msra.mxu0 0.0
      %1432 = vmatpush.msra.mxu0 0.0
      %1433 = vmatpush.msra.mxu0 0.0
      %1434 = vmatpush.msra.mxu0 0.0
      %1435 = vmatpush.msra.mxu0 0.0
      %1436 = vmatpush.msra.mxu0 0.0
      %1437 = vmatpush.msra.mxu0 0.0
      %1438 = vmatpush.msra.mxu0 %v1299
      %1439 = vmatpush.msra.mxu0 %v1291
      %1440 = vmatmul.f32.gmra.mxu0 %v1302
      %v1441 = vpop.f32.mrf.mxu0
      %v1442 = vadd.f32 0.0, %v1441
      %1443 = vdwg.mxu0
      %1444 = vmatpush.msra.mxu0 0.0
      %1445 = vmatpush.msra.mxu0 0.0
      %1446 = vmatpush.msra.mxu0 0.0
      %1447 = vmatpush.msra.mxu0 0.0
      %1448 = vmatpush.msra.mxu0 0.0
      %1449 = vmatpush.msra.mxu0 0.0
      %1450 = vmatpush.msra.mxu0 0.0
      %1451 = vmatpush.msra.mxu0 0.0
      %1452 = vmatpush.msra.mxu0 0.0
      %1453 = vmatpush.msra.mxu0 0.0
      %1454 = vmatpush.msra.mxu0 0.0
      %1455 = vmatpush.msra.mxu0 0.0
      %1456 = vmatpush.msra.mxu0 0.0
      %1457 = vmatpush.msra.mxu0 0.0
      %1458 = vmatpush.msra.mxu0 %v1300
      %1459 = vmatpush.msra.mxu0 %v1292
      %1460 = vmatmul.f32.gmra.mxu0 %v1302
      %v1461 = vpop.f32.mrf.mxu0
      %v1462 = vadd.f32 0.0, %v1461
      %1463 = vdwg.mxu0
      %v1472 = vrot.slane %v1342, 7
      %v1473 = vrot.slane %v1362, 6
      %v1474 = vrot.slane %v1382, 5
      %v1475 = vrot.slane %v1402, 4
      %v1476 = vrot.slane %v1422, 3
      %v1477 = vrot.slane %v1442, 2
      %v1478 = vrot.slane %v1462, 1
      %vm1479 = vcmask 1040384
      %v1480 = vsel %vm1479, %v1322, %v1472
      %vm1481 = vcmask 1042434
      %v1482 = vsel %vm1481, %v1473, %v1474
      %vm1483 = vcmask 1041408
      %v1484 = vsel %vm1483, %v1480, %v1482
      %vm1485 = vcmask 1044484
      %v1486 = vsel %vm1485, %v1475, %v1476
      %vm1487 = vcmask 1046534
      %v1488 = vsel %vm1487, %v1477, %v1478
      %vm1489 = vcmask 1045508
      %v1490 = vsel %vm1489, %v1486, %v1488
      %vm1491 = vcmask 1043456
      %v1492 = vsel %vm1491, %v1484, %v1490
      %1494 = vst [vmem:[%s418] sm:$0xff] %v1492
      %p1495 = scmp.lt.s32.totalorder %s22, 1
      %s1496 = scalar_select %p1495, %s22, 1
      %s1497 = smul.addr %s1496, 8
      %s1498 = scalar_lea.vmem %s11, %s1497
      // Predicated region
      $region65: #{cris_forward.1} parent=63 // pred_check
        %p1499 = pneg %p286
      $region66: #{cris_forward.1} parent=63 // pred_check_branch
        %1501 = sbr.rel (%p1499) target = $region68
      $region67: #{cris_forward.1} parent=63 // pred_region
        _
      $region68: #{cris_forward.1} parent=63 // pred_fallthru
        _
    $region64: #{cris_forward.1} parent=5 // pred_fallthru
      _
    %p1502 = scmp.le.s32.totalorder 2, %s17
    // Predicated region
    $region69: #{cris_forward.1} parent=5 // pred_check
      %p1503 = pneg %p1502
    $region70: #{cris_forward.1} parent=5 // pred_check_branch
      %1505 = sbr.rel (%p1503) target = $region72
    $region71: #{cris_forward.1} parent=5 // pred_region
      %s1506 = ssub.s32 %s17, 2
      // Predicated region
      $region73: #{cris_forward.1} parent=71 // pred_check
        %p1507 = pneg %p292
      $region74: #{cris_forward.1} parent=71 // pred_check_branch
        %1509 = sbr.rel (%p1507) target = $region76
      $region75: #{cris_forward.1} parent=71 // pred_region
        %p1510 = scmp.lt.s32.totalorder %s23, 1
        %s1511 = scalar_select %p1510, %s23, 1
        %s1512 = smul.addr %s1511, 8
        %s1513 = scalar_lea.vmem %s11, %s1512
      $region76: #{cris_forward.1} parent=71 // pred_fallthru
        _
    $region72: #{cris_forward.1} parent=5 // pred_fallthru
      _
  $region6: #{cris_forward.1} parent=0 // loop_footer
    %s21 = sadd.s32 1, %s17
  $region7: #{cris_forward.1} parent=0 // loop_footer_branch
    %16 = sbr.rel target = $region3
  $region8: #{cris_forward.1} parent=0 // loop_exit
    _

</llo_original>
